<compile_context>
chip_gen: v5e
topology: v5e:2x2
jax: 0.10.0
libtpu: 0.0.40
codegen_flags: <defaults>
</compile_context>

<pallas_src>
import math

import jax
import jax.numpy as jnp
from jax import lax
from jax.experimental import pallas as pl
from jax.experimental.pallas import tpu as pltpu

LN_EPS = 1e-6


def _layer_norm(x, gamma, beta, eps=LN_EPS):
    mu = jnp.mean(x, axis=-1, keepdims=True)
    var = jnp.mean(jnp.square(x - mu), axis=-1, keepdims=True)
    return (x - mu) * lax.rsqrt(var + eps) * gamma + beta


# ----------------------------------------------------------------------------
# Fused kernel: encoder layer + NBME head epilogue (Bblk batch rows per step)
# ----------------------------------------------------------------------------
def nbme_fused_kernel(x_ref, bias_ref, tgt_ref,
                      wqkv_ref, bqkv_ref, wo_ref, bo_ref,
                      w1_ref, b1_ref, w2_ref, b2_ref,
                      ln_ref, ow_ref, ob_ref,
                      probs_ref, bce_ref):
    xb = x_ref[...]                              # (Bblk, L, H) bf16
    Bblk, L, H = xb.shape
    N = Bblk * L

    x2 = xb.reshape(N, H)                        # bf16 rows for the MXU
    xf = x2.astype(jnp.float32)                  # f32 residual / LN path

    # Fused QKV projection: one (N,H)x(H,3H) matmul, bf16 operands / f32 acc.
    # 1/sqrt(H) already folded into the Q columns by the wrapper.
    qkv = jnp.dot(x2, wqkv_ref[...], preferred_element_type=jnp.float32)
    qkv = (qkv + bqkv_ref[...]).astype(jnp.bfloat16)     # single bf16 copy
    q = qkv[:, :H].reshape(Bblk, L, H)
    k = qkv[:, H:2 * H].reshape(Bblk, L, H)
    v = qkv[:, 2 * H:].reshape(Bblk, L, H)

    # Self-attention batched over the Bblk block; scores lane dim stays L.
    scores = jnp.einsum('bqd,bkd->bqk', q, k,
                        preferred_element_type=jnp.float32)    # (Bblk, L, L)
    scores = scores + bias_ref[...]              # precomputed (mask-1)*1e9
    scores = scores - jnp.max(scores, axis=-1, keepdims=True)
    p = jnp.exp(scores)
    p = (p * pl.reciprocal(jnp.sum(p, axis=-1, keepdims=True),
                           approx=True)).astype(jnp.bfloat16)
    ctx = jnp.einsum('bqk,bkd->bqd', p, v,
                     preferred_element_type=jnp.float32)       # (Bblk, L, H)
    attn = jnp.dot(ctx.reshape(N, H).astype(jnp.bfloat16), wo_ref[...],
                   preferred_element_type=jnp.float32) + bo_ref[...]

    ln = ln_ref[...]                             # (4, H): g1, b1, g2, b2
    h1 = _layer_norm(xf + attn, ln[0:1], ln[1:2])

    # Feed-forward (bf16 matmuls, f32 elementwise — v5e has no bf16 VPU/EUP).
    ff = jnp.dot(h1.astype(jnp.bfloat16), w1_ref[...],
                 preferred_element_type=jnp.float32) + b1_ref[...]
    ff = jax.nn.gelu(ff, approximate=True)       # TODO(synk): erf GELU in HF
    ff = jnp.dot(ff.astype(jnp.bfloat16), w2_ref[...],
                 preferred_element_type=jnp.float32) + b2_ref[...]
    seq = _layer_norm(h1 + ff, ln[2:3], ln[3:4])                # (N, H) f32

    # ---- fused NBME head epilogue (lane-dense (1, N) row) -------------------
    # logits = seq @ W_out^T + b computed as (1,H)x(H,N) so the result is a
    # lane-dense row: unmasked stores, no sublane->lane relayout.
    # The 5 dropout branches are identity at inference -> mean == one branch.
    logits = lax.dot_general(ow_ref[...], seq, (((1,), (1,)), ((), ())),
                             preferred_element_type=jnp.float32) + ob_ref[0]
    probs_ref[...] = jax.nn.sigmoid(logits)                     # (1, N)

    # Per-token BCEWithLogits, zeroed where target == -100 (ignored positions).
    t = tgt_ref[...]                                            # (1, N)
    bce = (jnp.maximum(logits, 0.0) - logits * t
           + jnp.log1p(jnp.exp(-jnp.abs(logits))))
    bce_ref[...] = jnp.where(t != -100.0, bce, 0.0)


# ----------------------------------------------------------------------------
# pallas_call builder
# ----------------------------------------------------------------------------
def _vmem_limit_bytes():
    # Gen-aware VMEM budget: ~85% of physical, capped at 100 MiB
    # (~54 MiB on v7x's 64 MiB/TC, ~100 MiB on v5e/v6e's 128 MiB).
    try:
        phys = pltpu.get_tpu_info().vmem_capacity_bytes
        return int(min(100 * 2 ** 20, phys * 0.85))
    except Exception:
        return 56 * 2 ** 20


def _build_call(Bp, L, H, F, Bblk, single_buffer_weights):
    nblk = Bp // Bblk
    N = Bblk * L

    row3 = lambda b: (b, 0, 0)       # per-block activation tiles
    rowf = lambda b: (b, 0)          # per-block flat rows (targets / outputs)
    inv = lambda b: (0, 0)           # grid-invariant weight blocks

    # Grid-invariant weights: single-buffer them (double-buffering an
    # invariant block is pure VMEM waste — ~24 MiB at roberta-large scale).
    wkw = dict(pipeline_mode=pl.Buffered(1)) if single_buffer_weights else {}
    wspec = lambda shape: pl.BlockSpec(shape, inv, **wkw)

    flops = int(Bp * L * (2 * H * 3 * H      # fused QKV
                          + 4 * L * H        # attention matmuls
                          + 2 * H * H        # output projection
                          + 4 * H * F        # FFN
                          + 2 * H))          # head
    transcendentals = int(Bp * L * (L + F + 3))
    bytes_accessed = int(2 * Bp * L * H                     # bf16 embeddings
                         + 2 * (4 * H * H + 2 * H * F)      # bf16 weights
                         + 4 * (10 * H + F + 1)             # biases / LN / head
                         + 4 * 4 * Bp * L)                  # bias/tgt/outputs

    return pl.pallas_call(
        nbme_fused_kernel,
        out_shape=(jax.ShapeDtypeStruct((nblk, N), jnp.float32),   # sigmoid
                   jax.ShapeDtypeStruct((nblk, N), jnp.float32)),  # masked BCE
        grid=(nblk,),
        in_specs=[
            pl.BlockSpec((Bblk, L, H), row3),    # x (bf16 embeddings)
            pl.BlockSpec((Bblk, 1, L), row3),    # additive attn-mask bias
            pl.BlockSpec((1, N), rowf),          # targets (flat per block)
            wspec((H, 3 * H)),                   # wqkv (Q pre-scaled, bf16)
            wspec((1, 3 * H)),                   # bqkv
            wspec((H, H)),                       # wo (bf16)
            wspec((1, H)),                       # bo
            wspec((H, F)),                       # w1 (bf16)
            wspec((1, F)),                       # b1
            wspec((F, H)),                       # w2 (bf16)
            wspec((1, H)),                       # b2
            wspec((4, H)),                       # LN params [g1; b1; g2; b2]
            wspec((1, H)),                       # head weight [1, H]
            pl.BlockSpec(memory_space=pltpu.MemorySpace.SMEM),   # head bias (1,)
        ],
        out_specs=(pl.BlockSpec((1, N), rowf),   # lane-dense output slabs
                   pl.BlockSpec((1, N), rowf)),
        compiler_params=pltpu.CompilerParams(
            # TODO(synk): switch to pltpu.CORE_PARALLEL on v7x (2 TCs) once the
            # batch grid has >1 step per core.
            dimension_semantics=("parallel",),
            vmem_limit_bytes=_vmem_limit_bytes()),
        cost_estimate=pl.CostEstimate(flops=flops,
                                      transcendentals=transcendentals,
                                      bytes_accessed=bytes_accessed),
    )


# ----------------------------------------------------------------------------
# Wrapper: embedding gather, padding, weight packing, pallas_call
# ----------------------------------------------------------------------------
def nbme_forward(params, input_ids, attention_mask, targets=None,
                 target_rows=256):
    B, L = input_ids.shape
    H = params['word_emb'].shape[-1]
    F = params['w1'].shape[-1]

    # Rows per grid step: >= target_rows MXU rows when possible (fills a
    # 256x256 v6e/v7x MXU tile; v5e's 128x128 a fortiori), VMEM permitting.
    Bblk = max(1, min(B, target_rows // L))
    nblk = pl.cdiv(B, Bblk)
    Bp = nblk * Bblk
    N = Bblk * L

    has_target = targets is not None
    if targets is None:
        targets = jnp.full((B, L), -100.0, jnp.float32)
    targets = targets.astype(jnp.float32)

    # ---- plain-JAX glue: pad batch, gather embeddings, pack weights ----
    ids = input_ids
    mask = attention_mask.astype(jnp.float32)
    tgt = targets
    if Bp != B:
        pad = Bp - B
        ids = jnp.concatenate([ids, jnp.zeros((pad, L), ids.dtype)], 0)
        mask = jnp.concatenate([mask, jnp.zeros((pad, L), mask.dtype)], 0)
        tgt = jnp.concatenate([tgt, jnp.full((pad, L), -100.0, jnp.float32)], 0)

    # Embeddings shipped to the kernel in bf16 (halves activation HBM traffic).
    x = (params['word_emb'][ids]
         + params['pos_emb'][:L][None, :, :]).astype(jnp.bfloat16)
    # Additive attention-mask bias precomputed once (0 = keep, -1e9 = pad).
    bias = ((mask - 1.0) * 1e9).reshape(Bp, 1, L)
    tgt_flat = tgt.reshape(nblk, N)

    # Fused QKV weights; 1/sqrt(H) scale folded into the Q columns.
    scale = 1.0 / math.sqrt(H)
    wqkv = jnp.concatenate([params['wq'] * scale, params['wk'], params['wv']],
                           axis=1).astype(jnp.bfloat16)            # (H, 3H)
    bqkv = jnp.concatenate([params['bq'] * scale, params['bk'], params['bv']],
                           axis=1).astype(jnp.float32)             # (1, 3H)
    wo = params['wo'].astype(jnp.bfloat16)
    w1 = params['w1'].astype(jnp.bfloat16)
    w2 = params['w2'].astype(jnp.bfloat16)
    ln = jnp.concatenate([params['ln1_g'], params['ln1_b'],
                          params['ln2_g'], params['ln2_b']], axis=0)  # (4, H)

    args = (x, bias, tgt_flat,
            wqkv, bqkv, wo, params['bo'],
            w1, params['b1'], w2, params['b2'],
            ln, params['out_w'], params['out_b'])

    try:
        call = _build_call(Bp, L, H, F, Bblk, single_buffer_weights=True)
        probs, bce = call(*args)
        jax.block_until_ready((probs, bce))
    except Exception:
        # TODO(synk): pl.Buffered(1) on the top-level pallas_call unsupported
        # by this jax build; fall back to default double-buffered weights.
        call = _build_call(Bp, L, H, F, Bblk, single_buffer_weights=False)
        probs, bce = call(*args)

    probs = probs.reshape(Bp, L)[:B]
    bce = bce.reshape(Bp, L)[:B]

    ret = {'logits': probs.reshape(B, L, 1)}     # matches torch.sigmoid(logits)
    if has_target:
        valid = (targets != -100.0).astype(jnp.float32)
        count = jnp.maximum(jnp.sum(valid), 1.0)   # guard 0/0 when all ignored
        ret['loss'] = jnp.sum(bce) / count
        ret['target'] = targets
    return ret


def init_params(key, vocab=100, max_len=32, H=128, F=256):
    ks = jax.random.split(key, 12)

    def n(i, shape, scale=0.02):
        return (scale * jax.random.normal(ks[i], shape)).astype(jnp.float32)

    return dict(
        word_emb=n(0, (vocab, H)),
        pos_emb=n(1, (max_len, H)),
        wq=n(2, (H, H)), wk=n(3, (H, H)), wv=n(4, (H, H)), wo=n(5, (H, H)),
        bq=n(6, (1, H)), bk=n(7, (1, H)), bv=n(8, (1, H)),
        bo=jnp.zeros((1, H), jnp.float32),
        w1=n(9, (H, F)), b1=jnp.zeros((1, F), jnp.float32),
        w2=n(10, (F, H)), b2=jnp.zeros((1, H), jnp.float32),
        ln1_g=jnp.ones((1, H), jnp.float32), ln1_b=jnp.zeros((1, H), jnp.float32),
        ln2_g=jnp.ones((1, H), jnp.float32), ln2_b=jnp.zeros((1, H), jnp.float32),
        out_w=n(11, (1, H)),                              # nn.Linear(H, 1).weight
        out_b=jnp.zeros((1,), jnp.float32),               # nn.Linear(H, 1).bias
    )


if __name__ == "__main__":
    B, L, H, F = 2, 8, 128, 256

    key = jax.random.PRNGKey(0)
    kp, kid, ktg = jax.random.split(key, 3)

    params = init_params(kp, vocab=100, max_len=32, H=H, F=F)

    input_ids = jax.random.randint(kid, (B, L), 0, 100, dtype=jnp.int32)
    attention_mask = jnp.ones((B, L), jnp.int32).at[:, -2:].set(0)   # pad last 2
    targets = jax.random.bernoulli(ktg, 0.3, (B, L)).astype(jnp.float32)
    targets = jnp.where(attention_mask == 1, targets, -100.0)        # ignored slots

    ret = nbme_forward(params, input_ids, attention_mask, targets)
    jax.block_until_ready(ret)

    assert ret['logits'].shape == (B, L, 1)
    assert ret['loss'].shape == ()
    assert bool(jnp.isfinite(ret['loss']))
    print("KERNEL_OK")
</pallas_src>

<mosaic_0001>
module attributes {stable_mosaic.version = 11 : i64} {
  func.func @nbme_fused_kernel(%arg0: i32, %arg1: memref<2x8x128xbf16, #tpu.memory_space<vmem>>, %arg2: memref<2x1x8xf32, #tpu.memory_space<vmem>>, %arg3: memref<1x16xf32, #tpu.memory_space<vmem>>, %arg4: memref<128x384xbf16, #tpu.memory_space<vmem>>, %arg5: memref<1x384xf32, #tpu.memory_space<vmem>>, %arg6: memref<128x128xbf16, #tpu.memory_space<vmem>>, %arg7: memref<1x128xf32, #tpu.memory_space<vmem>>, %arg8: memref<128x256xbf16, #tpu.memory_space<vmem>>, %arg9: memref<1x256xf32, #tpu.memory_space<vmem>>, %arg10: memref<256x128xbf16, #tpu.memory_space<vmem>>, %arg11: memref<1x128xf32, #tpu.memory_space<vmem>>, %arg12: memref<4x128xf32, #tpu.memory_space<vmem>>, %arg13: memref<1x128xf32, #tpu.memory_space<vmem>>, %arg14: memref<1xf32, #tpu.memory_space<smem>>, %arg15: memref<1x16xf32, #tpu.memory_space<vmem>>, %arg16: memref<1x16xf32, #tpu.memory_space<vmem>>) attributes {dimension_semantics = [#tpu.dimension_semantics<parallel>], iteration_bounds = array<i64: 1>, scalar_prefetch = 0 : i64, scratch_operands = 0 : i64, tpu.core_type = #tpu.core_type<tc>, window_params = [{transform_indices = @transform_0, window_bounds = array<i64: 2, 8, 128>}, {transform_indices = @transform_1, window_bounds = array<i64: 2, 1, 8>}, {transform_indices = @transform_2, window_bounds = array<i64: 1, 16>}, {pipeline_mode = #tpu.pipeline_mode<synchronous>, transform_indices = @transform_3, window_bounds = array<i64: 128, 384>}, {pipeline_mode = #tpu.pipeline_mode<synchronous>, transform_indices = @transform_4, window_bounds = array<i64: 1, 384>}, {pipeline_mode = #tpu.pipeline_mode<synchronous>, transform_indices = @transform_5, window_bounds = array<i64: 128, 128>}, {pipeline_mode = #tpu.pipeline_mode<synchronous>, transform_indices = @transform_6, window_bounds = array<i64: 1, 128>}, {pipeline_mode = #tpu.pipeline_mode<synchronous>, transform_indices = @transform_7, window_bounds = array<i64: 128, 256>}, {pipeline_mode = #tpu.pipeline_mode<synchronous>, transform_indices = @transform_8, window_bounds = array<i64: 1, 256>}, {pipeline_mode = #tpu.pipeline_mode<synchronous>, transform_indices = @transform_9, window_bounds = array<i64: 256, 128>}, {pipeline_mode = #tpu.pipeline_mode<synchronous>, transform_indices = @transform_10, window_bounds = array<i64: 1, 128>}, {pipeline_mode = #tpu.pipeline_mode<synchronous>, transform_indices = @transform_11, window_bounds = array<i64: 4, 128>}, {pipeline_mode = #tpu.pipeline_mode<synchronous>, transform_indices = @transform_12, window_bounds = array<i64: 1, 128>}, {transform_indices = @transform_13, window_bounds = array<i64: 1>}, {transform_indices = @transform_14, window_bounds = array<i64: 1, 16>}, {transform_indices = @transform_15, window_bounds = array<i64: 1, 16>}]} {
    %c0 = arith.constant 0 : index
    %c0_0 = arith.constant 0 : index
    %c0_1 = arith.constant 0 : index
    %0 = vector.load %arg1[%c0, %c0_0, %c0_1] : memref<2x8x128xbf16, #tpu.memory_space<vmem>>, vector<2x8x128xbf16>
    %1 = vector.shape_cast %0 : vector<2x8x128xbf16> to vector<16x128xbf16>
    %2 = arith.extf %1 : vector<16x128xbf16> to vector<16x128xf32>
    %c0_2 = arith.constant 0 : index
    %c0_3 = arith.constant 0 : index
    %3 = vector.load %arg4[%c0_2, %c0_3] : memref<128x384xbf16, #tpu.memory_space<vmem>>, vector<128x384xbf16>
    %cst = arith.constant dense<0.000000e+00> : vector<16x384xf32>
    %4 = tpu.matmul %1, %3, %cst {dimension_numbers = #tpu.dot_dimension_numbers<[1], [0], [0], [1], [0, 0, 1, 1], [], []>} : vector<16x128xbf16>, vector<128x384xbf16>, vector<16x384xf32> -> vector<16x384xf32>
    %c0_4 = arith.constant 0 : index
    %c0_5 = arith.constant 0 : index
    %5 = vector.load %arg5[%c0_4, %c0_5] : memref<1x384xf32, #tpu.memory_space<vmem>>, vector<1x384xf32>
    %6 = vector.broadcast %5 : vector<1x384xf32> to vector<16x384xf32>
    %7 = arith.addf %4, %6 : vector<16x384xf32>
    %8 = arith.truncf %7 : vector<16x384xf32> to vector<16x384xbf16>
    %9 = vector.extract_strided_slice %8 {offsets = [0, 0], sizes = [16, 128], strides = [1, 1]} : vector<16x384xbf16> to vector<16x128xbf16>
    %10 = vector.shape_cast %9 : vector<16x128xbf16> to vector<2x8x128xbf16>
    %11 = vector.extract_strided_slice %8 {offsets = [0, 128], sizes = [16, 128], strides = [1, 1]} : vector<16x384xbf16> to vector<16x128xbf16>
    %12 = vector.shape_cast %11 : vector<16x128xbf16> to vector<2x8x128xbf16>
    %13 = vector.extract_strided_slice %8 {offsets = [0, 256], sizes = [16, 128], strides = [1, 1]} : vector<16x384xbf16> to vector<16x128xbf16>
    %14 = vector.shape_cast %13 : vector<16x128xbf16> to vector<2x8x128xbf16>
    "tpu.trace_start"() <{level = 10 : i32, message = "bqd,bkd->bqk"}> : () -> ()
    %cst_6 = arith.constant dense<0.000000e+00> : vector<2x8x8xf32>
    %15 = tpu.matmul %10, %12, %cst_6 {dimension_numbers = #tpu.dot_dimension_numbers<[2], [2], [1], [1], [0, 0, 0, 1, 1, 1], [0], [0]>} : vector<2x8x128xbf16>, vector<2x8x128xbf16>, vector<2x8x8xf32> -> vector<2x8x8xf32>
    "tpu.trace_stop"() : () -> ()
    %c0_7 = arith.constant 0 : index
    %c0_8 = arith.constant 0 : index
    %c0_9 = arith.constant 0 : index
    %16 = vector.load %arg2[%c0_7, %c0_8, %c0_9] : memref<2x1x8xf32, #tpu.memory_space<vmem>>, vector<2x1x8xf32>
    %17 = vector.broadcast %16 : vector<2x1x8xf32> to vector<2x8x8xf32>
    %18 = arith.addf %15, %17 : vector<2x8x8xf32>
    %cst_10 = arith.constant dense<0xFF800000> : vector<2x8xf32>
    %19 = vector.multi_reduction <maximumf>, %18, %cst_10 [2] : vector<2x8x8xf32> to vector<2x8xf32>
    %20 = vector.shape_cast %19 : vector<2x8xf32> to vector<2x8x1xf32>
    %21 = vector.broadcast %20 : vector<2x8x1xf32> to vector<2x8x8xf32>
    %22 = arith.subf %18, %21 : vector<2x8x8xf32>
    %23 = math.exp %22 : vector<2x8x8xf32>
    %cst_11 = arith.constant dense<0.000000e+00> : vector<2x8xf32>
    %24 = vector.multi_reduction <add>, %23, %cst_11 [2] : vector<2x8x8xf32> to vector<2x8xf32>
    %25 = vector.shape_cast %24 : vector<2x8xf32> to vector<2x8x1xf32>
    %26 = tpu.reciprocal %25 {approx = true} : vector<2x8x1xf32> -> vector<2x8x1xf32>
    %27 = vector.broadcast %26 : vector<2x8x1xf32> to vector<2x8x8xf32>
    %28 = arith.mulf %23, %27 : vector<2x8x8xf32>
    %29 = arith.truncf %28 : vector<2x8x8xf32> to vector<2x8x8xbf16>
    "tpu.trace_start"() <{level = 10 : i32, message = "bqk,bkd->bqd"}> : () -> ()
    %cst_12 = arith.constant dense<0.000000e+00> : vector<2x8x128xf32>
    %30 = tpu.matmul %29, %14, %cst_12 {dimension_numbers = #tpu.dot_dimension_numbers<[2], [1], [1], [2], [0, 0, 0, 1, 1, 2], [0], [0]>} : vector<2x8x8xbf16>, vector<2x8x128xbf16>, vector<2x8x128xf32> -> vector<2x8x128xf32>
    "tpu.trace_stop"() : () -> ()
    %31 = vector.shape_cast %30 : vector<2x8x128xf32> to vector<16x128xf32>
    %32 = arith.truncf %31 : vector<16x128xf32> to vector<16x128xbf16>
    %c0_13 = arith.constant 0 : index
    %c0_14 = arith.constant 0 : index
    %33 = vector.load %arg6[%c0_13, %c0_14] : memref<128x128xbf16, #tpu.memory_space<vmem>>, vector<128x128xbf16>
    %cst_15 = arith.constant dense<0.000000e+00> : vector<16x128xf32>
    %34 = tpu.matmul %32, %33, %cst_15 {dimension_numbers = #tpu.dot_dimension_numbers<[1], [0], [0], [1], [0, 0, 1, 1], [], []>} : vector<16x128xbf16>, vector<128x128xbf16>, vector<16x128xf32> -> vector<16x128xf32>
    %c0_16 = arith.constant 0 : index
    %c0_17 = arith.constant 0 : index
    %35 = vector.load %arg7[%c0_16, %c0_17] : memref<1x128xf32, #tpu.memory_space<vmem>>, vector<1x128xf32>
    %36 = vector.broadcast %35 : vector<1x128xf32> to vector<16x128xf32>
    %37 = arith.addf %34, %36 : vector<16x128xf32>
    %c0_18 = arith.constant 0 : index
    %c0_19 = arith.constant 0 : index
    %38 = vector.load %arg12[%c0_18, %c0_19] : memref<4x128xf32, #tpu.memory_space<vmem>>, vector<4x128xf32>
    %39 = arith.addf %2, %37 : vector<16x128xf32>
    %40 = vector.extract_strided_slice %38 {offsets = [0, 0], sizes = [1, 128], strides = [1, 1]} : vector<4x128xf32> to vector<1x128xf32>
    %41 = vector.extract_strided_slice %38 {offsets = [1, 0], sizes = [1, 128], strides = [1, 1]} : vector<4x128xf32> to vector<1x128xf32>
    %cst_20 = arith.constant dense<0.000000e+00> : vector<16xf32>
    %42 = vector.multi_reduction <add>, %39, %cst_20 [1] : vector<16x128xf32> to vector<16xf32>
    %43 = vector.shape_cast %42 : vector<16xf32> to vector<16x1xf32>
    %cst_21 = arith.constant 1.280000e+02 : f32
    %44 = vector.broadcast %cst_21 : f32 to vector<16x1xf32>
    %45 = arith.divf %43, %44 : vector<16x1xf32>
    %46 = vector.broadcast %45 : vector<16x1xf32> to vector<16x128xf32>
    %47 = arith.subf %39, %46 : vector<16x128xf32>
    %48 = arith.mulf %47, %47 : vector<16x128xf32>
    %cst_22 = arith.constant dense<0.000000e+00> : vector<16xf32>
    %49 = vector.multi_reduction <add>, %48, %cst_22 [1] : vector<16x128xf32> to vector<16xf32>
    %50 = vector.shape_cast %49 : vector<16xf32> to vector<16x1xf32>
    %cst_23 = arith.constant 1.280000e+02 : f32
    %51 = vector.broadcast %cst_23 : f32 to vector<16x1xf32>
    %52 = arith.divf %50, %51 : vector<16x1xf32>
    %53 = vector.broadcast %45 : vector<16x1xf32> to vector<16x128xf32>
    %54 = arith.subf %39, %53 : vector<16x128xf32>
    %cst_24 = arith.constant 9.99999997E-7 : f32
    %55 = vector.broadcast %cst_24 : f32 to vector<16x1xf32>
    %56 = arith.addf %52, %55 : vector<16x1xf32>
    %57 = math.rsqrt %56 : vector<16x1xf32>
    %58 = vector.broadcast %57 : vector<16x1xf32> to vector<16x128xf32>
    %59 = arith.mulf %54, %58 : vector<16x128xf32>
    %60 = vector.broadcast %40 : vector<1x128xf32> to vector<16x128xf32>
    %61 = arith.mulf %59, %60 : vector<16x128xf32>
    %62 = vector.broadcast %41 : vector<1x128xf32> to vector<16x128xf32>
    %63 = arith.addf %61, %62 : vector<16x128xf32>
    %64 = arith.truncf %63 : vector<16x128xf32> to vector<16x128xbf16>
    %c0_25 = arith.constant 0 : index
    %c0_26 = arith.constant 0 : index
    %65 = vector.load %arg8[%c0_25, %c0_26] : memref<128x256xbf16, #tpu.memory_space<vmem>>, vector<128x256xbf16>
    %cst_27 = arith.constant dense<0.000000e+00> : vector<16x256xf32>
    %66 = tpu.matmul %64, %65, %cst_27 {dimension_numbers = #tpu.dot_dimension_numbers<[1], [0], [0], [1], [0, 0, 1, 1], [], []>} : vector<16x128xbf16>, vector<128x256xbf16>, vector<16x256xf32> -> vector<16x256xf32>
    %c0_28 = arith.constant 0 : index
    %c0_29 = arith.constant 0 : index
    %67 = vector.load %arg9[%c0_28, %c0_29] : memref<1x256xf32, #tpu.memory_space<vmem>>, vector<1x256xf32>
    %68 = vector.broadcast %67 : vector<1x256xf32> to vector<16x256xf32>
    %69 = arith.addf %66, %68 : vector<16x256xf32>
    %70 = arith.mulf %69, %69 : vector<16x256xf32>
    %71 = arith.mulf %69, %70 : vector<16x256xf32>
    %cst_30 = arith.constant 4.471500e-02 : f32
    %72 = vector.broadcast %cst_30 : f32 to vector<16x256xf32>
    %73 = arith.mulf %72, %71 : vector<16x256xf32>
    %74 = arith.addf %69, %73 : vector<16x256xf32>
    %cst_31 = arith.constant 0.797884583 : f32
    %75 = vector.broadcast %cst_31 : f32 to vector<16x256xf32>
    %76 = arith.mulf %75, %74 : vector<16x256xf32>
    %77 = math.tanh %76 : vector<16x256xf32>
    %cst_32 = arith.constant 1.000000e+00 : f32
    %78 = vector.broadcast %cst_32 : f32 to vector<16x256xf32>
    %79 = arith.addf %78, %77 : vector<16x256xf32>
    %cst_33 = arith.constant 5.000000e-01 : f32
    %80 = vector.broadcast %cst_33 : f32 to vector<16x256xf32>
    %81 = arith.mulf %80, %79 : vector<16x256xf32>
    %82 = arith.mulf %69, %81 : vector<16x256xf32>
    %83 = arith.truncf %82 : vector<16x256xf32> to vector<16x256xbf16>
    %c0_34 = arith.constant 0 : index
    %c0_35 = arith.constant 0 : index
    %84 = vector.load %arg10[%c0_34, %c0_35] : memref<256x128xbf16, #tpu.memory_space<vmem>>, vector<256x128xbf16>
    %cst_36 = arith.constant dense<0.000000e+00> : vector<16x128xf32>
    %85 = tpu.matmul %83, %84, %cst_36 {dimension_numbers = #tpu.dot_dimension_numbers<[1], [0], [0], [1], [0, 0, 1, 1], [], []>} : vector<16x256xbf16>, vector<256x128xbf16>, vector<16x128xf32> -> vector<16x128xf32>
    %c0_37 = arith.constant 0 : index
    %c0_38 = arith.constant 0 : index
    %86 = vector.load %arg11[%c0_37, %c0_38] : memref<1x128xf32, #tpu.memory_space<vmem>>, vector<1x128xf32>
    %87 = vector.broadcast %86 : vector<1x128xf32> to vector<16x128xf32>
    %88 = arith.addf %85, %87 : vector<16x128xf32>
    %89 = arith.addf %63, %88 : vector<16x128xf32>
    %90 = vector.extract_strided_slice %38 {offsets = [2, 0], sizes = [1, 128], strides = [1, 1]} : vector<4x128xf32> to vector<1x128xf32>
    %91 = vector.extract_strided_slice %38 {offsets = [3, 0], sizes = [1, 128], strides = [1, 1]} : vector<4x128xf32> to vector<1x128xf32>
    %cst_39 = arith.constant dense<0.000000e+00> : vector<16xf32>
    %92 = vector.multi_reduction <add>, %89, %cst_39 [1] : vector<16x128xf32> to vector<16xf32>
    %93 = vector.shape_cast %92 : vector<16xf32> to vector<16x1xf32>
    %cst_40 = arith.constant 1.280000e+02 : f32
    %94 = vector.broadcast %cst_40 : f32 to vector<16x1xf32>
    %95 = arith.divf %93, %94 : vector<16x1xf32>
    %96 = vector.broadcast %95 : vector<16x1xf32> to vector<16x128xf32>
    %97 = arith.subf %89, %96 : vector<16x128xf32>
    %98 = arith.mulf %97, %97 : vector<16x128xf32>
    %cst_41 = arith.constant dense<0.000000e+00> : vector<16xf32>
    %99 = vector.multi_reduction <add>, %98, %cst_41 [1] : vector<16x128xf32> to vector<16xf32>
    %100 = vector.shape_cast %99 : vector<16xf32> to vector<16x1xf32>
    %cst_42 = arith.constant 1.280000e+02 : f32
    %101 = vector.broadcast %cst_42 : f32 to vector<16x1xf32>
    %102 = arith.divf %100, %101 : vector<16x1xf32>
    %103 = vector.broadcast %95 : vector<16x1xf32> to vector<16x128xf32>
    %104 = arith.subf %89, %103 : vector<16x128xf32>
    %cst_43 = arith.constant 9.99999997E-7 : f32
    %105 = vector.broadcast %cst_43 : f32 to vector<16x1xf32>
    %106 = arith.addf %102, %105 : vector<16x1xf32>
    %107 = math.rsqrt %106 : vector<16x1xf32>
    %108 = vector.broadcast %107 : vector<16x1xf32> to vector<16x128xf32>
    %109 = arith.mulf %104, %108 : vector<16x128xf32>
    %110 = vector.broadcast %90 : vector<1x128xf32> to vector<16x128xf32>
    %111 = arith.mulf %109, %110 : vector<16x128xf32>
    %112 = vector.broadcast %91 : vector<1x128xf32> to vector<16x128xf32>
    %113 = arith.addf %111, %112 : vector<16x128xf32>
    %c0_44 = arith.constant 0 : index
    %c0_45 = arith.constant 0 : index
    %114 = vector.load %arg13[%c0_44, %c0_45] : memref<1x128xf32, #tpu.memory_space<vmem>>, vector<1x128xf32>
    %cst_46 = arith.constant dense<0.000000e+00> : vector<1x16xf32>
    %115 = tpu.matmul %114, %113, %cst_46 {dimension_numbers = #tpu.dot_dimension_numbers<[1], [1], [0], [0], [0, 0, 1, 0], [], []>} : vector<1x128xf32>, vector<16x128xf32>, vector<1x16xf32> -> vector<1x16xf32>
    %c0_47 = arith.constant 0 : index
    %116 = memref.load %arg14[%c0_47] : memref<1xf32, #tpu.memory_space<smem>>
    %117 = vector.broadcast %116 : f32 to vector<1x16xf32>
    %118 = arith.addf %115, %117 : vector<1x16xf32>
    %119 = arith.negf %118 : vector<1x16xf32>
    %120 = math.exp %119 : vector<1x16xf32>
    %cst_48 = arith.constant 1.000000e+00 : f32
    %121 = vector.broadcast %cst_48 : f32 to vector<1x16xf32>
    %122 = arith.addf %121, %120 : vector<1x16xf32>
    %123 = arith.divf %121, %122 : vector<1x16xf32>
    %c0_49 = arith.constant 0 : index
    %c0_50 = arith.constant 0 : index
    %124 = vector.load %arg15[%c0_49, %c0_50] : memref<1x16xf32, #tpu.memory_space<vmem>>, vector<1x16xf32>
    tpu.vector_store %arg15[%c0_49, %c0_50], %123 {strides = array<i32>} : memref<1x16xf32, #tpu.memory_space<vmem>>, vector<1x16xf32>,
    %c0_51 = arith.constant 0 : index
    %c0_52 = arith.constant 0 : index
    %125 = vector.load %arg3[%c0_51, %c0_52] : memref<1x16xf32, #tpu.memory_space<vmem>>, vector<1x16xf32>
    %cst_53 = arith.constant 0.000000e+00 : f32
    %126 = vector.broadcast %cst_53 : f32 to vector<1x16xf32>
    %127 = arith.maximumf %118, %126 : vector<1x16xf32>
    %128 = arith.mulf %118, %125 : vector<1x16xf32>
    %129 = arith.subf %127, %128 : vector<1x16xf32>
    %130 = math.absf %118 : vector<1x16xf32>
    %cst_54 = arith.constant 0.000000e+00 : f32
    %131 = vector.broadcast %cst_54 : f32 to vector<1x16xf32>
    %132 = arith.subf %131, %130 : vector<1x16xf32>
    %133 = math.exp %132 : vector<1x16xf32>
    %134 = math.log1p %133 : vector<1x16xf32>
    %135 = arith.addf %129, %134 : vector<1x16xf32>
    %cst_55 = arith.constant -1.000000e+02 : f32
    %136 = vector.broadcast %cst_55 : f32 to vector<1x16xf32>
    %137 = arith.cmpf one, %125, %136 : vector<1x16xf32>
    %cst_56 = arith.constant 0.000000e+00 : f32
    %138 = vector.broadcast %cst_56 : f32 to vector<1x16xf32>
    %139 = arith.select %137, %135, %138 : vector<1x16xi1>, vector<1x16xf32>
    %c0_57 = arith.constant 0 : index
    %c0_58 = arith.constant 0 : index
    %140 = vector.load %arg16[%c0_57, %c0_58] : memref<1x16xf32, #tpu.memory_space<vmem>>, vector<1x16xf32>
    tpu.vector_store %arg16[%c0_57, %c0_58], %139 {strides = array<i32>} : memref<1x16xf32, #tpu.memory_space<vmem>>, vector<1x16xf32>,
    return
  }
  func.func @transform_0(%arg0: i32) -> (i32, i32, i32) {
    %c0_i32 = arith.constant 0 : i32
    %c0_i32_0 = arith.constant 0 : i32
    %c0_i32_1 = arith.constant 0 : i32
    return %arg0, %c0_i32, %c0_i32_0 : i32, i32, i32
  }
  func.func @transform_1(%arg0: i32) -> (i32, i32, i32) {
    %c0_i32 = arith.constant 0 : i32
    %c0_i32_0 = arith.constant 0 : i32
    %c0_i32_1 = arith.constant 0 : i32
    return %arg0, %c0_i32, %c0_i32_0 : i32, i32, i32
  }
  func.func @transform_2(%arg0: i32) -> (i32, i32) {
    %c0_i32 = arith.constant 0 : i32
    %c0_i32_0 = arith.constant 0 : i32
    return %arg0, %c0_i32 : i32, i32
  }
  func.func @transform_3(%arg0: i32) -> (i32, i32) {
    %c0_i32 = arith.constant 0 : i32
    %c0_i32_0 = arith.constant 0 : i32
    %c0_i32_1 = arith.constant 0 : i32
    return %c0_i32, %c0_i32_0 : i32, i32
  }
  func.func @transform_4(%arg0: i32) -> (i32, i32) {
    %c0_i32 = arith.constant 0 : i32
    %c0_i32_0 = arith.constant 0 : i32
    %c0_i32_1 = arith.constant 0 : i32
    return %c0_i32, %c0_i32_0 : i32, i32
  }
  func.func @transform_5(%arg0: i32) -> (i32, i32) {
    %c0_i32 = arith.constant 0 : i32
    %c0_i32_0 = arith.constant 0 : i32
    %c0_i32_1 = arith.constant 0 : i32
    return %c0_i32, %c0_i32_0 : i32, i32
  }
  func.func @transform_6(%arg0: i32) -> (i32, i32) {
    %c0_i32 = arith.constant 0 : i32
    %c0_i32_0 = arith.constant 0 : i32
    %c0_i32_1 = arith.constant 0 : i32
    return %c0_i32, %c0_i32_0 : i32, i32
  }
  func.func @transform_7(%arg0: i32) -> (i32, i32) {
    %c0_i32 = arith.constant 0 : i32
    %c0_i32_0 = arith.constant 0 : i32
    %c0_i32_1 = arith.constant 0 : i32
    return %c0_i32, %c0_i32_0 : i32, i32
  }
  func.func @transform_8(%arg0: i32) -> (i32, i32) {
    %c0_i32 = arith.constant 0 : i32
    %c0_i32_0 = arith.constant 0 : i32
    %c0_i32_1 = arith.constant 0 : i32
    return %c0_i32, %c0_i32_0 : i32, i32
  }
  func.func @transform_9(%arg0: i32) -> (i32, i32) {
    %c0_i32 = arith.constant 0 : i32
    %c0_i32_0 = arith.constant 0 : i32
    %c0_i32_1 = arith.constant 0 : i32
    return %c0_i32, %c0_i32_0 : i32, i32
  }
  func.func @transform_10(%arg0: i32) -> (i32, i32) {
    %c0_i32 = arith.constant 0 : i32
    %c0_i32_0 = arith.constant 0 : i32
    %c0_i32_1 = arith.constant 0 : i32
    return %c0_i32, %c0_i32_0 : i32, i32
  }
  func.func @transform_11(%arg0: i32) -> (i32, i32) {
    %c0_i32 = arith.constant 0 : i32
    %c0_i32_0 = arith.constant 0 : i32
    %c0_i32_1 = arith.constant 0 : i32
    return %c0_i32, %c0_i32_0 : i32, i32
  }
  func.func @transform_12(%arg0: i32) -> (i32, i32) {
    %c0_i32 = arith.constant 0 : i32
    %c0_i32_0 = arith.constant 0 : i32
    %c0_i32_1 = arith.constant 0 : i32
    return %c0_i32, %c0_i32_0 : i32, i32
  }
  func.func @transform_13(%arg0: i32) -> i32 {
    %c0_i32 = arith.constant 0 : i32
    %c0_i32_0 = arith.constant 0 : i32
    return %c0_i32 : i32
  }
  func.func @transform_14(%arg0: i32) -> (i32, i32) {
    %c0_i32 = arith.constant 0 : i32
    %c0_i32_0 = arith.constant 0 : i32
    return %arg0, %c0_i32 : i32, i32
  }
  func.func @transform_15(%arg0: i32) -> (i32, i32) {
    %c0_i32 = arith.constant 0 : i32
    %c0_i32_0 = arith.constant 0 : i32
    return %arg0, %c0_i32 : i32, i32
  }
}

module attributes {stable_mosaic.version = 11 : i64} {
  func.func @nbme_fused_kernel(%arg0: i32, %arg1: memref<2x8x128xbf16, #tpu.memory_space<vmem>>, %arg2: memref<2x1x8xf32, #tpu.memory_space<vmem>>, %arg3: memref<1x16xf32, #tpu.memory_space<vmem>>, %arg4: memref<128x384xbf16, #tpu.memory_space<vmem>>, %arg5: memref<1x384xf32, #tpu.memory_space<vmem>>, %arg6: memref<128x128xbf16, #tpu.memory_space<vmem>>, %arg7: memref<1x128xf32, #tpu.memory_space<vmem>>, %arg8: memref<128x256xbf16, #tpu.memory_space<vmem>>, %arg9: memref<1x256xf32, #tpu.memory_space<vmem>>, %arg10: memref<256x128xbf16, #tpu.memory_space<vmem>>, %arg11: memref<1x128xf32, #tpu.memory_space<vmem>>, %arg12: memref<4x128xf32, #tpu.memory_space<vmem>>, %arg13: memref<1x128xf32, #tpu.memory_space<vmem>>, %arg14: memref<1xf32, #tpu.memory_space<smem>>, %arg15: memref<1x16xf32, #tpu.memory_space<vmem>>, %arg16: memref<1x16xf32, #tpu.memory_space<vmem>>) attributes {dimension_semantics = [#tpu.dimension_semantics<parallel>], iteration_bounds = array<i64: 1>, scalar_prefetch = 0 : i64, scratch_operands = 0 : i64, tpu.core_type = #tpu.core_type<tc>, window_params = [{transform_indices = @transform_0, window_bounds = array<i64: 2, 8, 128>}, {transform_indices = @transform_1, window_bounds = array<i64: 2, 1, 8>}, {transform_indices = @transform_2, window_bounds = array<i64: 1, 16>}, {pipeline_mode = #tpu.pipeline_mode<synchronous>, transform_indices = @transform_3, window_bounds = array<i64: 128, 384>}, {pipeline_mode = #tpu.pipeline_mode<synchronous>, transform_indices = @transform_4, window_bounds = array<i64: 1, 384>}, {pipeline_mode = #tpu.pipeline_mode<synchronous>, transform_indices = @transform_5, window_bounds = array<i64: 128, 128>}, {pipeline_mode = #tpu.pipeline_mode<synchronous>, transform_indices = @transform_6, window_bounds = array<i64: 1, 128>}, {pipeline_mode = #tpu.pipeline_mode<synchronous>, transform_indices = @transform_7, window_bounds = array<i64: 128, 256>}, {pipeline_mode = #tpu.pipeline_mode<synchronous>, transform_indices = @transform_8, window_bounds = array<i64: 1, 256>}, {pipeline_mode = #tpu.pipeline_mode<synchronous>, transform_indices = @transform_9, window_bounds = array<i64: 256, 128>}, {pipeline_mode = #tpu.pipeline_mode<synchronous>, transform_indices = @transform_10, window_bounds = array<i64: 1, 128>}, {pipeline_mode = #tpu.pipeline_mode<synchronous>, transform_indices = @transform_11, window_bounds = array<i64: 4, 128>}, {pipeline_mode = #tpu.pipeline_mode<synchronous>, transform_indices = @transform_12, window_bounds = array<i64: 1, 128>}, {transform_indices = @transform_13, window_bounds = array<i64: 1>}, {transform_indices = @transform_14, window_bounds = array<i64: 1, 16>}, {transform_indices = @transform_15, window_bounds = array<i64: 1, 16>}]} {
    %c0 = arith.constant 0 : index
    %c0_0 = arith.constant 0 : index
    %c0_1 = arith.constant 0 : index
    %0 = vector.load %arg1[%c0, %c0_0, %c0_1] : memref<2x8x128xbf16, #tpu.memory_space<vmem>>, vector<2x8x128xbf16>
    %1 = vector.shape_cast %0 : vector<2x8x128xbf16> to vector<16x128xbf16>
    %2 = arith.extf %1 : vector<16x128xbf16> to vector<16x128xf32>
    %c0_2 = arith.constant 0 : index
    %c0_3 = arith.constant 0 : index
    %3 = vector.load %arg4[%c0_2, %c0_3] : memref<128x384xbf16, #tpu.memory_space<vmem>>, vector<128x384xbf16>
    %cst = arith.constant dense<0.000000e+00> : vector<16x384xf32>
    %4 = tpu.matmul %1, %3, %cst {dimension_numbers = #tpu.dot_dimension_numbers<[1], [0], [0], [1], [0, 0, 1, 1], [], []>} : vector<16x128xbf16>, vector<128x384xbf16>, vector<16x384xf32> -> vector<16x384xf32>
    %c0_4 = arith.constant 0 : index
    %c0_5 = arith.constant 0 : index
    %5 = vector.load %arg5[%c0_4, %c0_5] : memref<1x384xf32, #tpu.memory_space<vmem>>, vector<1x384xf32>
    %6 = vector.broadcast %5 : vector<1x384xf32> to vector<16x384xf32>
    %7 = arith.addf %4, %6 : vector<16x384xf32>
    %8 = arith.truncf %7 : vector<16x384xf32> to vector<16x384xbf16>
    %9 = vector.extract_strided_slice %8 {offsets = [0, 0], sizes = [16, 128], strides = [1, 1]} : vector<16x384xbf16> to vector<16x128xbf16>
    %10 = vector.shape_cast %9 : vector<16x128xbf16> to vector<2x8x128xbf16>
    %11 = vector.extract_strided_slice %8 {offsets = [0, 128], sizes = [16, 128], strides = [1, 1]} : vector<16x384xbf16> to vector<16x128xbf16>
    %12 = vector.shape_cast %11 : vector<16x128xbf16> to vector<2x8x128xbf16>
    %13 = vector.extract_strided_slice %8 {offsets = [0, 256], sizes = [16, 128], strides = [1, 1]} : vector<16x384xbf16> to vector<16x128xbf16>
    %14 = vector.shape_cast %13 : vector<16x128xbf16> to vector<2x8x128xbf16>
    "tpu.trace_start"() <{level = 10 : i32, message = "bqd,bkd->bqk"}> : () -> ()
    %cst_6 = arith.constant dense<0.000000e+00> : vector<2x8x8xf32>
    %15 = tpu.matmul %10, %12, %cst_6 {dimension_numbers = #tpu.dot_dimension_numbers<[2], [2], [1], [1], [0, 0, 0, 1, 1, 1], [0], [0]>} : vector<2x8x128xbf16>, vector<2x8x128xbf16>, vector<2x8x8xf32> -> vector<2x8x8xf32>
    "tpu.trace_stop"() : () -> ()
    %c0_7 = arith.constant 0 : index
    %c0_8 = arith.constant 0 : index
    %c0_9 = arith.constant 0 : index
    %16 = vector.load %arg2[%c0_7, %c0_8, %c0_9] : memref<2x1x8xf32, #tpu.memory_space<vmem>>, vector<2x1x8xf32>
    %17 = vector.broadcast %16 : vector<2x1x8xf32> to vector<2x8x8xf32>
    %18 = arith.addf %15, %17 : vector<2x8x8xf32>
    %cst_10 = arith.constant dense<0xFF800000> : vector<2x8xf32>
    %19 = vector.multi_reduction <maximumf>, %18, %cst_10 [2] : vector<2x8x8xf32> to vector<2x8xf32>
    %20 = vector.shape_cast %19 : vector<2x8xf32> to vector<2x8x1xf32>
    %21 = vector.broadcast %20 : vector<2x8x1xf32> to vector<2x8x8xf32>
    %22 = arith.subf %18, %21 : vector<2x8x8xf32>
    %23 = math.exp %22 : vector<2x8x8xf32>
    %cst_11 = arith.constant dense<0.000000e+00> : vector<2x8xf32>
    %24 = vector.multi_reduction <add>, %23, %cst_11 [2] : vector<2x8x8xf32> to vector<2x8xf32>
    %25 = vector.shape_cast %24 : vector<2x8xf32> to vector<2x8x1xf32>
    %26 = tpu.reciprocal %25 {approx = true} : vector<2x8x1xf32> -> vector<2x8x1xf32>
    %27 = vector.broadcast %26 : vector<2x8x1xf32> to vector<2x8x8xf32>
    %28 = arith.mulf %23, %27 : vector<2x8x8xf32>
    %29 = arith.truncf %28 : vector<2x8x8xf32> to vector<2x8x8xbf16>
    "tpu.trace_start"() <{level = 10 : i32, message = "bqk,bkd->bqd"}> : () -> ()
    %cst_12 = arith.constant dense<0.000000e+00> : vector<2x8x128xf32>
    %30 = tpu.matmul %29, %14, %cst_12 {dimension_numbers = #tpu.dot_dimension_numbers<[2], [1], [1], [2], [0, 0, 0, 1, 1, 2], [0], [0]>} : vector<2x8x8xbf16>, vector<2x8x128xbf16>, vector<2x8x128xf32> -> vector<2x8x128xf32>
    "tpu.trace_stop"() : () -> ()
    %31 = vector.shape_cast %30 : vector<2x8x128xf32> to vector<16x128xf32>
    %32 = arith.truncf %31 : vector<16x128xf32> to vector<16x128xbf16>
    %c0_13 = arith.constant 0 : index
    %c0_14 = arith.constant 0 : index
    %33 = vector.load %arg6[%c0_13, %c0_14] : memref<128x128xbf16, #tpu.memory_space<vmem>>, vector<128x128xbf16>
    %cst_15 = arith.constant dense<0.000000e+00> : vector<16x128xf32>
    %34 = tpu.matmul %32, %33, %cst_15 {dimension_numbers = #tpu.dot_dimension_numbers<[1], [0], [0], [1], [0, 0, 1, 1], [], []>} : vector<16x128xbf16>, vector<128x128xbf16>, vector<16x128xf32> -> vector<16x128xf32>
    %c0_16 = arith.constant 0 : index
    %c0_17 = arith.constant 0 : index
    %35 = vector.load %arg7[%c0_16, %c0_17] : memref<1x128xf32, #tpu.memory_space<vmem>>, vector<1x128xf32>
    %36 = vector.broadcast %35 : vector<1x128xf32> to vector<16x128xf32>
    %37 = arith.addf %34, %36 : vector<16x128xf32>
    %c0_18 = arith.constant 0 : index
    %c0_19 = arith.constant 0 : index
    %38 = vector.load %arg12[%c0_18, %c0_19] : memref<4x128xf32, #tpu.memory_space<vmem>>, vector<4x128xf32>
    %39 = arith.addf %2, %37 : vector<16x128xf32>
    %40 = vector.extract_strided_slice %38 {offsets = [0, 0], sizes = [1, 128], strides = [1, 1]} : vector<4x128xf32> to vector<1x128xf32>
    %41 = vector.extract_strided_slice %38 {offsets = [1, 0], sizes = [1, 128], strides = [1, 1]} : vector<4x128xf32> to vector<1x128xf32>
    %cst_20 = arith.constant dense<0.000000e+00> : vector<16xf32>
    %42 = vector.multi_reduction <add>, %39, %cst_20 [1] : vector<16x128xf32> to vector<16xf32>
    %43 = vector.shape_cast %42 : vector<16xf32> to vector<16x1xf32>
    %cst_21 = arith.constant 1.280000e+02 : f32
    %44 = vector.broadcast %cst_21 : f32 to vector<16x1xf32>
    %45 = arith.divf %43, %44 : vector<16x1xf32>
    %46 = vector.broadcast %45 : vector<16x1xf32> to vector<16x128xf32>
    %47 = arith.subf %39, %46 : vector<16x128xf32>
    %48 = arith.mulf %47, %47 : vector<16x128xf32>
    %cst_22 = arith.constant dense<0.000000e+00> : vector<16xf32>
    %49 = vector.multi_reduction <add>, %48, %cst_22 [1] : vector<16x128xf32> to vector<16xf32>
    %50 = vector.shape_cast %49 : vector<16xf32> to vector<16x1xf32>
    %cst_23 = arith.constant 1.280000e+02 : f32
    %51 = vector.broadcast %cst_23 : f32 to vector<16x1xf32>
    %52 = arith.divf %50, %51 : vector<16x1xf32>
    %53 = vector.broadcast %45 : vector<16x1xf32> to vector<16x128xf32>
    %54 = arith.subf %39, %53 : vector<16x128xf32>
    %cst_24 = arith.constant 9.99999997E-7 : f32
    %55 = vector.broadcast %cst_24 : f32 to vector<16x1xf32>
    %56 = arith.addf %52, %55 : vector<16x1xf32>
    %57 = math.rsqrt %56 : vector<16x1xf32>
    %58 = vector.broadcast %57 : vector<16x1xf32> to vector<16x128xf32>
    %59 = arith.mulf %54, %58 : vector<16x128xf32>
    %60 = vector.broadcast %40 : vector<1x128xf32> to vector<16x128xf32>
    %61 = arith.mulf %59, %60 : vector<16x128xf32>
    %62 = vector.broadcast %41 : vector<1x128xf32> to vector<16x128xf32>
    %63 = arith.addf %61, %62 : vector<16x128xf32>
    %64 = arith.truncf %63 : vector<16x128xf32> to vector<16x128xbf16>
    %c0_25 = arith.constant 0 : index
    %c0_26 = arith.constant 0 : index
    %65 = vector.load %arg8[%c0_25, %c0_26] : memref<128x256xbf16, #tpu.memory_space<vmem>>, vector<128x256xbf16>
    %cst_27 = arith.constant dense<0.000000e+00> : vector<16x256xf32>
    %66 = tpu.matmul %64, %65, %cst_27 {dimension_numbers = #tpu.dot_dimension_numbers<[1], [0], [0], [1], [0, 0, 1, 1], [], []>} : vector<16x128xbf16>, vector<128x256xbf16>, vector<16x256xf32> -> vector<16x256xf32>
    %c0_28 = arith.constant 0 : index
    %c0_29 = arith.constant 0 : index
    %67 = vector.load %arg9[%c0_28, %c0_29] : memref<1x256xf32, #tpu.memory_space<vmem>>, vector<1x256xf32>
    %68 = vector.broadcast %67 : vector<1x256xf32> to vector<16x256xf32>
    %69 = arith.addf %66, %68 : vector<16x256xf32>
    %70 = arith.mulf %69, %69 : vector<16x256xf32>
    %71 = arith.mulf %69, %70 : vector<16x256xf32>
    %cst_30 = arith.constant 4.471500e-02 : f32
    %72 = vector.broadcast %cst_30 : f32 to vector<16x256xf32>
    %73 = arith.mulf %72, %71 : vector<16x256xf32>
    %74 = arith.addf %69, %73 : vector<16x256xf32>
    %cst_31 = arith.constant 0.797884583 : f32
    %75 = vector.broadcast %cst_31 : f32 to vector<16x256xf32>
    %76 = arith.mulf %75, %74 : vector<16x256xf32>
    %77 = math.tanh %76 : vector<16x256xf32>
    %cst_32 = arith.constant 1.000000e+00 : f32
    %78 = vector.broadcast %cst_32 : f32 to vector<16x256xf32>
    %79 = arith.addf %78, %77 : vector<16x256xf32>
    %cst_33 = arith.constant 5.000000e-01 : f32
    %80 = vector.broadcast %cst_33 : f32 to vector<16x256xf32>
    %81 = arith.mulf %80, %79 : vector<16x256xf32>
    %82 = arith.mulf %69, %81 : vector<16x256xf32>
    %83 = arith.truncf %82 : vector<16x256xf32> to vector<16x256xbf16>
    %c0_34 = arith.constant 0 : index
    %c0_35 = arith.constant 0 : index
    %84 = vector.load %arg10[%c0_34, %c0_35] : memref<256x128xbf16, #tpu.memory_space<vmem>>, vector<256x128xbf16>
    %cst_36 = arith.constant dense<0.000000e+00> : vector<16x128xf32>
    %85 = tpu.matmul %83, %84, %cst_36 {dimension_numbers = #tpu.dot_dimension_numbers<[1], [0], [0], [1], [0, 0, 1, 1], [], []>} : vector<16x256xbf16>, vector<256x128xbf16>, vector<16x128xf32> -> vector<16x128xf32>
    %c0_37 = arith.constant 0 : index
    %c0_38 = arith.constant 0 : index
    %86 = vector.load %arg11[%c0_37, %c0_38] : memref<1x128xf32, #tpu.memory_space<vmem>>, vector<1x128xf32>
    %87 = vector.broadcast %86 : vector<1x128xf32> to vector<16x128xf32>
    %88 = arith.addf %85, %87 : vector<16x128xf32>
    %89 = arith.addf %63, %88 : vector<16x128xf32>
    %90 = vector.extract_strided_slice %38 {offsets = [2, 0], sizes = [1, 128], strides = [1, 1]} : vector<4x128xf32> to vector<1x128xf32>
    %91 = vector.extract_strided_slice %38 {offsets = [3, 0], sizes = [1, 128], strides = [1, 1]} : vector<4x128xf32> to vector<1x128xf32>
    %cst_39 = arith.constant dense<0.000000e+00> : vector<16xf32>
    %92 = vector.multi_reduction <add>, %89, %cst_39 [1] : vector<16x128xf32> to vector<16xf32>
    %93 = vector.shape_cast %92 : vector<16xf32> to vector<16x1xf32>
    %cst_40 = arith.constant 1.280000e+02 : f32
    %94 = vector.broadcast %cst_40 : f32 to vector<16x1xf32>
    %95 = arith.divf %93, %94 : vector<16x1xf32>
    %96 = vector.broadcast %95 : vector<16x1xf32> to vector<16x128xf32>
    %97 = arith.subf %89, %96 : vector<16x128xf32>
    %98 = arith.mulf %97, %97 : vector<16x128xf32>
    %cst_41 = arith.constant dense<0.000000e+00> : vector<16xf32>
    %99 = vector.multi_reduction <add>, %98, %cst_41 [1] : vector<16x128xf32> to vector<16xf32>
    %100 = vector.shape_cast %99 : vector<16xf32> to vector<16x1xf32>
    %cst_42 = arith.constant 1.280000e+02 : f32
    %101 = vector.broadcast %cst_42 : f32 to vector<16x1xf32>
    %102 = arith.divf %100, %101 : vector<16x1xf32>
    %103 = vector.broadcast %95 : vector<16x1xf32> to vector<16x128xf32>
    %104 = arith.subf %89, %103 : vector<16x128xf32>
    %cst_43 = arith.constant 9.99999997E-7 : f32
    %105 = vector.broadcast %cst_43 : f32 to vector<16x1xf32>
    %106 = arith.addf %102, %105 : vector<16x1xf32>
    %107 = math.rsqrt %106 : vector<16x1xf32>
    %108 = vector.broadcast %107 : vector<16x1xf32> to vector<16x128xf32>
    %109 = arith.mulf %104, %108 : vector<16x128xf32>
    %110 = vector.broadcast %90 : vector<1x128xf32> to vector<16x128xf32>
    %111 = arith.mulf %109, %110 : vector<16x128xf32>
    %112 = vector.broadcast %91 : vector<1x128xf32> to vector<16x128xf32>
    %113 = arith.addf %111, %112 : vector<16x128xf32>
    %c0_44 = arith.constant 0 : index
    %c0_45 = arith.constant 0 : index
    %114 = vector.load %arg13[%c0_44, %c0_45] : memref<1x128xf32, #tpu.memory_space<vmem>>, vector<1x128xf32>
    %cst_46 = arith.constant dense<0.000000e+00> : vector<1x16xf32>
    %115 = tpu.matmul %114, %113, %cst_46 {dimension_numbers = #tpu.dot_dimension_numbers<[1], [1], [0], [0], [0, 0, 1, 0], [], []>} : vector<1x128xf32>, vector<16x128xf32>, vector<1x16xf32> -> vector<1x16xf32>
    %c0_47 = arith.constant 0 : index
    %116 = memref.load %arg14[%c0_47] : memref<1xf32, #tpu.memory_space<smem>>
    %117 = vector.broadcast %116 : f32 to vector<1x16xf32>
    %118 = arith.addf %115, %117 : vector<1x16xf32>
    %119 = arith.negf %118 : vector<1x16xf32>
    %120 = math.exp %119 : vector<1x16xf32>
    %cst_48 = arith.constant 1.000000e+00 : f32
    %121 = vector.broadcast %cst_48 : f32 to vector<1x16xf32>
    %122 = arith.addf %121, %120 : vector<1x16xf32>
    %123 = arith.divf %121, %122 : vector<1x16xf32>
    %c0_49 = arith.constant 0 : index
    %c0_50 = arith.constant 0 : index
    %124 = vector.load %arg15[%c0_49, %c0_50] : memref<1x16xf32, #tpu.memory_space<vmem>>, vector<1x16xf32>
    tpu.vector_store %arg15[%c0_49, %c0_50], %123 {strides = array<i32>} : memref<1x16xf32, #tpu.memory_space<vmem>>, vector<1x16xf32>,
    %c0_51 = arith.constant 0 : index
    %c0_52 = arith.constant 0 : index
    %125 = vector.load %arg3[%c0_51, %c0_52] : memref<1x16xf32, #tpu.memory_space<vmem>>, vector<1x16xf32>
    %cst_53 = arith.constant 0.000000e+00 : f32
    %126 = vector.broadcast %cst_53 : f32 to vector<1x16xf32>
    %127 = arith.maximumf %118, %126 : vector<1x16xf32>
    %128 = arith.mulf %118, %125 : vector<1x16xf32>
    %129 = arith.subf %127, %128 : vector<1x16xf32>
    %130 = math.absf %118 : vector<1x16xf32>
    %cst_54 = arith.constant 0.000000e+00 : f32
    %131 = vector.broadcast %cst_54 : f32 to vector<1x16xf32>
    %132 = arith.subf %131, %130 : vector<1x16xf32>
    %133 = math.exp %132 : vector<1x16xf32>
    %134 = math.log1p %133 : vector<1x16xf32>
    %135 = arith.addf %129, %134 : vector<1x16xf32>
    %cst_55 = arith.constant -1.000000e+02 : f32
    %136 = vector.broadcast %cst_55 : f32 to vector<1x16xf32>
    %137 = arith.cmpf one, %125, %136 : vector<1x16xf32>
    %cst_56 = arith.constant 0.000000e+00 : f32
    %138 = vector.broadcast %cst_56 : f32 to vector<1x16xf32>
    %139 = arith.select %137, %135, %138 : vector<1x16xi1>, vector<1x16xf32>
    %c0_57 = arith.constant 0 : index
    %c0_58 = arith.constant 0 : index
    %140 = vector.load %arg16[%c0_57, %c0_58] : memref<1x16xf32, #tpu.memory_space<vmem>>, vector<1x16xf32>
    tpu.vector_store %arg16[%c0_57, %c0_58], %139 {strides = array<i32>} : memref<1x16xf32, #tpu.memory_space<vmem>>, vector<1x16xf32>,
    return
  }
  func.func @transform_0(%arg0: i32) -> (i32, i32, i32) {
    %c0_i32 = arith.constant 0 : i32
    %c0_i32_0 = arith.constant 0 : i32
    %c0_i32_1 = arith.constant 0 : i32
    return %arg0, %c0_i32, %c0_i32_0 : i32, i32, i32
  }
  func.func @transform_1(%arg0: i32) -> (i32, i32, i32) {
    %c0_i32 = arith.constant 0 : i32
    %c0_i32_0 = arith.constant 0 : i32
    %c0_i32_1 = arith.constant 0 : i32
    return %arg0, %c0_i32, %c0_i32_0 : i32, i32, i32
  }
  func.func @transform_2(%arg0: i32) -> (i32, i32) {
    %c0_i32 = arith.constant 0 : i32
    %c0_i32_0 = arith.constant 0 : i32
    return %arg0, %c0_i32 : i32, i32
  }
  func.func @transform_3(%arg0: i32) -> (i32, i32) {
    %c0_i32 = arith.constant 0 : i32
    %c0_i32_0 = arith.constant 0 : i32
    %c0_i32_1 = arith.constant 0 : i32
    return %c0_i32, %c0_i32_0 : i32, i32
  }
  func.func @transform_4(%arg0: i32) -> (i32, i32) {
    %c0_i32 = arith.constant 0 : i32
    %c0_i32_0 = arith.constant 0 : i32
    %c0_i32_1 = arith.constant 0 : i32
    return %c0_i32, %c0_i32_0 : i32, i32
  }
  func.func @transform_5(%arg0: i32) -> (i32, i32) {
    %c0_i32 = arith.constant 0 : i32
    %c0_i32_0 = arith.constant 0 : i32
    %c0_i32_1 = arith.constant 0 : i32
    return %c0_i32, %c0_i32_0 : i32, i32
  }
  func.func @transform_6(%arg0: i32) -> (i32, i32) {
    %c0_i32 = arith.constant 0 : i32
    %c0_i32_0 = arith.constant 0 : i32
    %c0_i32_1 = arith.constant 0 : i32
    return %c0_i32, %c0_i32_0 : i32, i32
  }
  func.func @transform_7(%arg0: i32) -> (i32, i32) {
    %c0_i32 = arith.constant 0 : i32
    %c0_i32_0 = arith.constant 0 : i32
    %c0_i32_1 = arith.constant 0 : i32
    return %c0_i32, %c0_i32_0 : i32, i32
  }
  func.func @transform_8(%arg0: i32) -> (i32, i32) {
    %c0_i32 = arith.constant 0 : i32
    %c0_i32_0 = arith.constant 0 : i32
    %c0_i32_1 = arith.constant 0 : i32
    return %c0_i32, %c0_i32_0 : i32, i32
  }
  func.func @transform_9(%arg0: i32) -> (i32, i32) {
    %c0_i32 = arith.constant 0 : i32
    %c0_i32_0 = arith.constant 0 : i32
    %c0_i32_1 = arith.constant 0 : i32
    return %c0_i32, %c0_i32_0 : i32, i32
  }
  func.func @transform_10(%arg0: i32) -> (i32, i32) {
    %c0_i32 = arith.constant 0 : i32
    %c0_i32_0 = arith.constant 0 : i32
    %c0_i32_1 = arith.constant 0 : i32
    return %c0_i32, %c0_i32_0 : i32, i32
  }
  func.func @transform_11(%arg0: i32) -> (i32, i32) {
    %c0_i32 = arith.constant 0 : i32
    %c0_i32_0 = arith.constant 0 : i32
    %c0_i32_1 = arith.constant 0 : i32
    return %c0_i32, %c0_i32_0 : i32, i32
  }
  func.func @transform_12(%arg0: i32) -> (i32, i32) {
    %c0_i32 = arith.constant 0 : i32
    %c0_i32_0 = arith.constant 0 : i32
    %c0_i32_1 = arith.constant 0 : i32
    return %c0_i32, %c0_i32_0 : i32, i32
  }
  func.func @transform_13(%arg0: i32) -> i32 {
    %c0_i32 = arith.constant 0 : i32
    %c0_i32_0 = arith.constant 0 : i32
    return %c0_i32 : i32
  }
  func.func @transform_14(%arg0: i32) -> (i32, i32) {
    %c0_i32 = arith.constant 0 : i32
    %c0_i32_0 = arith.constant 0 : i32
    return %arg0, %c0_i32 : i32, i32
  }
  func.func @transform_15(%arg0: i32) -> (i32, i32) {
    %c0_i32 = arith.constant 0 : i32
    %c0_i32_0 = arith.constant 0 : i32
    return %arg0, %c0_i32 : i32, i32
  }
}

</mosaic_0001>

<llo_original>
// kernel: tpu_custom_call.1
$region0: #{tpu_custom_call.1}
  #allocation0 [shape = 'u32[]', space=smem, size = 0x4, offset = 0x4, fixed_abs, tag = 'smem constant byte address 0x4 - core index']
  #allocation1 [shape = 'u32[72,128]{1,0:T(1,128)}', space=vmem, size = 0x9000, scoped, tag = 'internal scratch']
  #allocation2 [shape = 'f32[1]{0:T(128)S(6)}', space=smem, size = 0x200, scoped, tag = 'scoped memory for tpu_custom_call.1']
  %s0 = inlined_call_operand.hbm [shape: bf16[2,8,128], index: 0, kind: input, shape index: {}]
  %s1 = inlined_call_operand.hbm [shape: f32[2,1,8], index: 1, kind: input, shape index: {}]
  %s2 = inlined_call_operand.hbm [shape: f32[1,16], index: 2, kind: input, shape index: {}]
  %s3 = inlined_call_operand.hbm [shape: bf16[128,384], index: 3, kind: input, shape index: {}]
  %s4 = inlined_call_operand.vmem [shape: f32[1,384], index: 4, kind: input, shape index: {}]
  %s5 = inlined_call_operand.hbm [shape: bf16[128,128], index: 5, kind: input, shape index: {}]
  %s6 = inlined_call_operand.hbm [shape: f32[1,128], index: 6, kind: input, shape index: {}]
  %s7 = inlined_call_operand.hbm [shape: bf16[128,256], index: 7, kind: input, shape index: {}]
  %s8 = inlined_call_operand.vmem [shape: f32[1,256], index: 8, kind: input, shape index: {}]
  %s9 = inlined_call_operand.hbm [shape: bf16[256,128], index: 9, kind: input, shape index: {}]
  %s10 = inlined_call_operand.vmem [shape: f32[1,128], index: 10, kind: input, shape index: {}]
  %s11 = inlined_call_operand.vmem [shape: f32[4,128], index: 11, kind: input, shape index: {}]
  %s12 = inlined_call_operand.vmem [shape: f32[1,128], index: 12, kind: input, shape index: {}]
  %s13 = inlined_call_operand.<no memory space> [shape: f32[1], index: 13, kind: input, shape index: {}]
  %s14 = inlined_call_operand.hbm [shape: f32[1,16], index: 14, kind: output, shape index: {0}]
  %s15 = inlined_call_operand.hbm [shape: f32[1,16], index: 15, kind: output, shape index: {1}]
  %16 = xla_tuple %s14, %s15
  %s17 = sld [smem:[#allocation0]]
  $region106: #{tpu_custom_call.1} parent=0
    _
  %s19 = ssub.s32 1, %s17
  %s20 = scalar_select 0, %s19, %s17
  %21 = sst [smem:[#allocation2]] %s13
  $region1: #{tpu_custom_call.1} parent=0
    #allocation3 [shape = 'u8[4096]{0}', space=vmem, size = 0x1000, scoped, tag = 'input window, operand 0, single buffered']
    #allocation4 [shape = 's32[1]{0}', space=sflag, size = 0x4, scoped, tag = 'scoped memory for tpu_custom_call.1']
    #allocation5 [shape = 's32[1]{0}', space=sflag, size = 0x4, scoped, tag = 'scoped memory for tpu_custom_call.1']
    #allocation6 [shape = 'u8[1024]{0}', space=vmem, size = 0x400, scoped, tag = 'input window, operand 1, single buffered']
    #allocation7 [shape = 's32[1]{0}', space=sflag, size = 0x4, scoped, tag = 'scoped memory for tpu_custom_call.1']
    #allocation8 [shape = 'u8[512]{0}', space=vmem, size = 0x400, scoped, tag = 'input window, operand 2, single buffered']
    #allocation9 [shape = 'u8[98304]{0}', space=vmem, size = 0x18000, scoped, tag = 'input window, operand 3, single buffered']
    #allocation10 [shape = 's32[1]{0}', space=sflag, size = 0x4, scoped, tag = 'scoped memory for tpu_custom_call.1']
    #allocation11 [shape = 'u8[32768]{0}', space=vmem, size = 0x8000, scoped, tag = 'input window, operand 5, single buffered']
    #allocation12 [shape = 'u8[512]{0}', space=vmem, size = 0x400, scoped, tag = 'input window, operand 6, single buffered']
    #allocation13 [shape = 's32[1]{0}', space=sflag, size = 0x4, scoped, tag = 'scoped memory for tpu_custom_call.1']
    #allocation14 [shape = 'u8[65536]{0}', space=vmem, size = 0x10000, scoped, tag = 'input window, operand 7, single buffered']
    #allocation15 [shape = 'u8[65536]{0}', space=vmem, size = 0x10000, scoped, tag = 'input window, operand 9, single buffered']
    #allocation16 [shape = 's32[1]{0}', space=sflag, size = 0x4, scoped, tag = 'scoped memory for tpu_custom_call.1']
    #allocation17 [shape = 'u8[512]{0}', space=vmem, size = 0x400, scoped, tag = 'output window, operand 0, single buffered']
    #allocation18 [shape = 'u8[512]{0}', space=vmem, size = 0x400, scoped, tag = 'output window, operand 1, single buffered']
    #allocation19 [shape = 's32[1]{0}', space=sflag, size = 0x4, scoped, tag = 'scoped memory for tpu_custom_call.1']
    %22 = vsyncpa [#allocation4], 0
    %23 = vsyncpa [#allocation7], 0
    %24 = vsyncpa [#allocation10], 0
    %25 = vsyncpa [#allocation13], 0
    %26 = vsyncpa [#allocation16], 0
    %27 = vsyncpa [#allocation5], 0
    %28 = vsyncpa [#allocation19], 0
    // Predicated region
    $region2: #{tpu_custom_call.1} parent=1 // pred_check
      _
    $region3: #{tpu_custom_call.1} parent=1 // pred_check_branch
      %30 = sbr.rel (0) target = $region5
    $region4: #{tpu_custom_call.1} parent=1 // pred_region
      %32 = vsyncadd [#allocation4], 0
      %s33 = sshll.u32 %s0, 4
      %s34 = int_to_ptr.hbm [resolvable:$true] %s33
      %s35 = sshll.u32 [#allocation3], 4
      %s36 = int_to_ptr.vmem [resolvable:$true] %s35
      %41 = dma.hbm_to_vmem [thread:$0]  %s34, 128, %s36, [#allocation4], 64, 64, 4
    $region5: #{tpu_custom_call.1} parent=1 // pred_fallthru
      _
    // Predicated region
    $region6: #{tpu_custom_call.1} parent=1 // pred_check
      _
    $region7: #{tpu_custom_call.1} parent=1 // pred_check_branch
      %43 = sbr.rel (0) target = $region9
    $region8: #{tpu_custom_call.1} parent=1 // pred_region
      %45 = vsyncadd [#allocation7], 0
      %s46 = sshll.u32 %s1, 4
      %s47 = int_to_ptr.hbm [resolvable:$true] %s46
      %s48 = sshll.u32 [#allocation6], 4
      %s49 = int_to_ptr.vmem [resolvable:$true] %s48
      %54 = dma.hbm_to_vmem [thread:$0]  %s47, 32, %s49, [#allocation7], 16, 16, 1
    $region9: #{tpu_custom_call.1} parent=1 // pred_fallthru
      _
    // Predicated region
    $region10: #{tpu_custom_call.1} parent=1 // pred_check
      _
    $region11: #{tpu_custom_call.1} parent=1 // pred_check_branch
      %56 = sbr.rel (0) target = $region13
    $region12: #{tpu_custom_call.1} parent=1 // pred_region
      %58 = vsyncadd [#allocation7], 0
      %s60 = sshll.u32 %s2, 4
      %s61 = int_to_ptr.hbm [resolvable:$true] %s60
      %s62 = sshll.u32 [#allocation8], 4
      %s63 = int_to_ptr.vmem [resolvable:$true] %s62
      %65 = dma.hbm_to_vmem [thread:$0]  %s61, 16, %s63, [#allocation7]
    $region13: #{tpu_custom_call.1} parent=1 // pred_fallthru
      _
    // Predicated region
    $region14: #{tpu_custom_call.1} parent=1 // pred_check
      _
    $region15: #{tpu_custom_call.1} parent=1 // pred_check_branch
      %67 = sbr.rel (0) target = $region17
    $region16: #{tpu_custom_call.1} parent=1 // pred_region
      %69 = vsyncadd [#allocation10], 0
      %s70 = sshll.u32 %s3, 4
      %s71 = int_to_ptr.hbm [resolvable:$true] %s70
      %s72 = sshll.u32 [#allocation9], 4
      %s73 = int_to_ptr.vmem [resolvable:$true] %s72
      %78 = dma.hbm_to_vmem [thread:$0]  %s71, 3072, %s73, [#allocation10], 192, 192, 12
    $region17: #{tpu_custom_call.1} parent=1 // pred_fallthru
      _
    // Predicated region
    $region18: #{tpu_custom_call.1} parent=1 // pred_check
      _
    $region19: #{tpu_custom_call.1} parent=1 // pred_check_branch
      %80 = sbr.rel (0) target = $region21
    $region20: #{tpu_custom_call.1} parent=1 // pred_region
      _
    $region21: #{tpu_custom_call.1} parent=1 // pred_fallthru
      _
    // Predicated region
    $region22: #{tpu_custom_call.1} parent=1 // pred_check
      _
    $region23: #{tpu_custom_call.1} parent=1 // pred_check_branch
      %82 = sbr.rel (0) target = $region25
    $region24: #{tpu_custom_call.1} parent=1 // pred_region
      %84 = vsyncadd [#allocation10], 0
      %s85 = sshll.u32 %s5, 4
      %s86 = int_to_ptr.hbm [resolvable:$true] %s85
      %s87 = sshll.u32 [#allocation11], 4
      %s88 = int_to_ptr.vmem [resolvable:$true] %s87
      %93 = dma.hbm_to_vmem [thread:$0]  %s86, 1024, %s88, [#allocation10], 64, 64, 4
    $region25: #{tpu_custom_call.1} parent=1 // pred_fallthru
      _
    // Predicated region
    $region26: #{tpu_custom_call.1} parent=1 // pred_check
      _
    $region27: #{tpu_custom_call.1} parent=1 // pred_check_branch
      %95 = sbr.rel (0) target = $region29
    $region28: #{tpu_custom_call.1} parent=1 // pred_region
      %97 = vsyncadd [#allocation13], 0
      %s99 = sshll.u32 %s6, 4
      %s100 = int_to_ptr.hbm [resolvable:$true] %s99
      %s101 = sshll.u32 [#allocation12], 4
      %s102 = int_to_ptr.vmem [resolvable:$true] %s101
      %104 = dma.hbm_to_vmem [thread:$0]  %s100, 16, %s102, [#allocation13]
    $region29: #{tpu_custom_call.1} parent=1 // pred_fallthru
      _
    // Predicated region
    $region30: #{tpu_custom_call.1} parent=1 // pred_check
      _
    $region31: #{tpu_custom_call.1} parent=1 // pred_check_branch
      %106 = sbr.rel (0) target = $region33
    $region32: #{tpu_custom_call.1} parent=1 // pred_region
      %108 = vsyncadd [#allocation13], 0
      %s109 = sshll.u32 %s7, 4
      %s110 = int_to_ptr.hbm [resolvable:$true] %s109
      %s111 = sshll.u32 [#allocation14], 4
      %s112 = int_to_ptr.vmem [resolvable:$true] %s111
      %117 = dma.hbm_to_vmem [thread:$0]  %s110, 2048, %s112, [#allocation13], 128, 128, 8
    $region33: #{tpu_custom_call.1} parent=1 // pred_fallthru
      _
    // Predicated region
    $region34: #{tpu_custom_call.1} parent=1 // pred_check
      _
    $region35: #{tpu_custom_call.1} parent=1 // pred_check_branch
      %119 = sbr.rel (0) target = $region37
    $region36: #{tpu_custom_call.1} parent=1 // pred_region
      _
    $region37: #{tpu_custom_call.1} parent=1 // pred_fallthru
      _
    // Predicated region
    $region38: #{tpu_custom_call.1} parent=1 // pred_check
      _
    $region39: #{tpu_custom_call.1} parent=1 // pred_check_branch
      %121 = sbr.rel (0) target = $region41
    $region40: #{tpu_custom_call.1} parent=1 // pred_region
      %123 = vsyncadd [#allocation16], 0
      %s124 = sshll.u32 %s9, 4
      %s125 = int_to_ptr.hbm [resolvable:$true] %s124
      %s126 = sshll.u32 [#allocation15], 4
      %s127 = int_to_ptr.vmem [resolvable:$true] %s126
      %132 = dma.hbm_to_vmem [thread:$0]  %s125, 2048, %s127, [#allocation16], 64, 64, 4
    $region41: #{tpu_custom_call.1} parent=1 // pred_fallthru
      _
    // Predicated region
    $region42: #{tpu_custom_call.1} parent=1 // pred_check
      _
    $region43: #{tpu_custom_call.1} parent=1 // pred_check_branch
      %134 = sbr.rel (0) target = $region45
    $region44: #{tpu_custom_call.1} parent=1 // pred_region
      _
    $region45: #{tpu_custom_call.1} parent=1 // pred_fallthru
      _
    // Predicated region
    $region46: #{tpu_custom_call.1} parent=1 // pred_check
      _
    $region47: #{tpu_custom_call.1} parent=1 // pred_check_branch
      %136 = sbr.rel (0) target = $region49
    $region48: #{tpu_custom_call.1} parent=1 // pred_region
      _
    $region49: #{tpu_custom_call.1} parent=1 // pred_fallthru
      _
    // Predicated region
    $region50: #{tpu_custom_call.1} parent=1 // pred_check
      _
    $region51: #{tpu_custom_call.1} parent=1 // pred_check_branch
      %138 = sbr.rel (0) target = $region53
    $region52: #{tpu_custom_call.1} parent=1 // pred_region
      _
    $region53: #{tpu_custom_call.1} parent=1 // pred_fallthru
      _
    // Predicated region
    $region54: #{tpu_custom_call.1} parent=1 // pred_check
      _
    $region55: #{tpu_custom_call.1} parent=1 // pred_check_branch
      %140 = sbr.rel (0) target = $region57
    $region56: #{tpu_custom_call.1} parent=1 // pred_region
      _
    $region57: #{tpu_custom_call.1} parent=1 // pred_fallthru
      _
    // Predicated region
    $region58: #{tpu_custom_call.1} parent=1 // pred_check
      _
    $region59: #{tpu_custom_call.1} parent=1 // pred_check_branch
      %142 = sbr.rel (0) target = $region61
    $region60: #{tpu_custom_call.1} parent=1 // pred_region
      %144 = dma.done [#allocation4], 128
    $region61: #{tpu_custom_call.1} parent=1 // pred_fallthru
      _
    // Predicated region
    $region62: #{tpu_custom_call.1} parent=1 // pred_check
      _
    $region63: #{tpu_custom_call.1} parent=1 // pred_check_branch
      %146 = sbr.rel (0) target = $region65
    $region64: #{tpu_custom_call.1} parent=1 // pred_region
      %148 = dma.done [#allocation7], 32
    $region65: #{tpu_custom_call.1} parent=1 // pred_fallthru
      _
    // Predicated region
    $region66: #{tpu_custom_call.1} parent=1 // pred_check
      _
    $region67: #{tpu_custom_call.1} parent=1 // pred_check_branch
      %150 = sbr.rel (0) target = $region69
    $region68: #{tpu_custom_call.1} parent=1 // pred_region
      %152 = dma.done [#allocation7], 16
    $region69: #{tpu_custom_call.1} parent=1 // pred_fallthru
      _
    // Predicated region
    $region70: #{tpu_custom_call.1} parent=1 // pred_check
      _
    $region71: #{tpu_custom_call.1} parent=1 // pred_check_branch
      %154 = sbr.rel (0) target = $region73
    $region72: #{tpu_custom_call.1} parent=1 // pred_region
      %156 = dma.done [#allocation10], 3072
    $region73: #{tpu_custom_call.1} parent=1 // pred_fallthru
      _
    // Predicated region
    $region74: #{tpu_custom_call.1} parent=1 // pred_check
      _
    $region75: #{tpu_custom_call.1} parent=1 // pred_check_branch
      %158 = sbr.rel (0) target = $region77
    $region76: #{tpu_custom_call.1} parent=1 // pred_region
      %160 = dma.done [#allocation10], 1024
    $region77: #{tpu_custom_call.1} parent=1 // pred_fallthru
      _
    // Predicated region
    $region78: #{tpu_custom_call.1} parent=1 // pred_check
      _
    $region79: #{tpu_custom_call.1} parent=1 // pred_check_branch
      %162 = sbr.rel (0) target = $region81
    $region80: #{tpu_custom_call.1} parent=1 // pred_region
      %164 = dma.done [#allocation13], 16
    $region81: #{tpu_custom_call.1} parent=1 // pred_fallthru
      _
    // Predicated region
    $region82: #{tpu_custom_call.1} parent=1 // pred_check
      _
    $region83: #{tpu_custom_call.1} parent=1 // pred_check_branch
      %166 = sbr.rel (0) target = $region85
    $region84: #{tpu_custom_call.1} parent=1 // pred_region
      %168 = dma.done [#allocation13], 2048
    $region85: #{tpu_custom_call.1} parent=1 // pred_fallthru
      _
    // Predicated region
    $region86: #{tpu_custom_call.1} parent=1 // pred_check
      _
    $region87: #{tpu_custom_call.1} parent=1 // pred_check_branch
      %170 = sbr.rel (0) target = $region89
    $region88: #{tpu_custom_call.1} parent=1 // pred_region
      %172 = dma.done [#allocation16], 2048
    $region89: #{tpu_custom_call.1} parent=1 // pred_fallthru
      _
    %v174 = vld [vmem:[#allocation3] sm:$0xf]
    %v175 = vld [vmem:[#allocation3 + $0x4] sm:$0xf]
    %v176 = vunpack.c.l.bf16 %v174
    %v177 = vunpack.c.l.bf16 %v175
    %v178 = vld [vmem:[#allocation9] sm:$0xff]
    %v179 = vld [vmem:[#allocation9 + $0x8] sm:$0xf]
    %v180 = vld [vmem:[#allocation9 + $0xc] sm:$0xff]
    %v181 = vld [vmem:[#allocation9 + $0x14] sm:$0xf]
    %v182 = vld [vmem:[#allocation9 + $0x18] sm:$0xff]
    %v183 = vld [vmem:[#allocation9 + $0x20] sm:$0xf]
    %v184 = vld [vmem:[#allocation9 + $0x24] sm:$0xff]
    %v185 = vld [vmem:[#allocation9 + $0x2c] sm:$0xf]
    %v186 = vld [vmem:[#allocation9 + $0x30] sm:$0xff]
    %v187 = vld [vmem:[#allocation9 + $0x38] sm:$0xf]
    %v188 = vld [vmem:[#allocation9 + $0x3c] sm:$0xff]
    %v189 = vld [vmem:[#allocation9 + $0x44] sm:$0xf]
    %v190 = vld [vmem:[#allocation9 + $0x48] sm:$0xff]
    %v191 = vld [vmem:[#allocation9 + $0x50] sm:$0xf]
    %v192 = vld [vmem:[#allocation9 + $0x54] sm:$0xff]
    %v193 = vld [vmem:[#allocation9 + $0x5c] sm:$0xf]
    %v194 = vld [vmem:[#allocation9 + $0x60] sm:$0xff]
    %v195 = vld [vmem:[#allocation9 + $0x68] sm:$0xf]
    %v196 = vld [vmem:[#allocation9 + $0x6c] sm:$0xff]
    %v197 = vld [vmem:[#allocation9 + $0x74] sm:$0xf]
    %v198 = vld [vmem:[#allocation9 + $0x78] sm:$0xff]
    %v199 = vld [vmem:[#allocation9 + $0x80] sm:$0xf]
    %v200 = vld [vmem:[#allocation9 + $0x84] sm:$0xff]
    %v201 = vld [vmem:[#allocation9 + $0x8c] sm:$0xf]
    %v202 = vld [vmem:[#allocation9 + $0x90] sm:$0xff]
    %v203 = vld [vmem:[#allocation9 + $0x98] sm:$0xf]
    %v204 = vld [vmem:[#allocation9 + $0x9c] sm:$0xff]
    %v205 = vld [vmem:[#allocation9 + $0xa4] sm:$0xf]
    %v206 = vld [vmem:[#allocation9 + $0xa8] sm:$0xff]
    %v207 = vld [vmem:[#allocation9 + $0xb0] sm:$0xf]
    %v208 = vld [vmem:[#allocation9 + $0xb4] sm:$0xff]
    %v209 = vld [vmem:[#allocation9 + $0xbc] sm:$0xf]
    %v210 = vld [vmem:[%s4] sm:$0x7]
    %v212 = vperm.slane %v210, 0
    %v213 = vperm.slane %v210, 1
    %v214 = vperm.slane %v210, 2
    %v220 = vunpack.c.l.b16 %v174
    %v221 = vunpack.c.l.b16 %v175
    %v222 = vpack.c.b16 %v221, %v220
    %v256 = vunpack.c.l.b16 %v178
    %v257 = vunpack.c.h.b16 %v178
    %v258 = vunpack.c.l.b16 %v179
    %v259 = vunpack.c.l.b16 %v180
    %v260 = vunpack.c.h.b16 %v180
    %v261 = vunpack.c.l.b16 %v181
    %v262 = vunpack.c.l.b16 %v182
    %v263 = vunpack.c.h.b16 %v182
    %v264 = vunpack.c.l.b16 %v183
    %v265 = vunpack.c.l.b16 %v184
    %v266 = vunpack.c.h.b16 %v184
    %v267 = vunpack.c.l.b16 %v185
    %v268 = vunpack.c.l.b16 %v186
    %v269 = vunpack.c.h.b16 %v186
    %v270 = vunpack.c.l.b16 %v187
    %v271 = vunpack.c.l.b16 %v188
    %v272 = vunpack.c.h.b16 %v188
    %v273 = vunpack.c.l.b16 %v189
    %v274 = vunpack.c.l.b16 %v190
    %v275 = vunpack.c.h.b16 %v190
    %v276 = vunpack.c.l.b16 %v191
    %v277 = vunpack.c.l.b16 %v192
    %v278 = vunpack.c.h.b16 %v192
    %v279 = vunpack.c.l.b16 %v193
    %v280 = vunpack.c.l.b16 %v194
    %v281 = vunpack.c.h.b16 %v194
    %v282 = vunpack.c.l.b16 %v195
    %v283 = vunpack.c.l.b16 %v196
    %v284 = vunpack.c.h.b16 %v196
    %v285 = vunpack.c.l.b16 %v197
    %v286 = vunpack.c.l.b16 %v198
    %v287 = vunpack.c.h.b16 %v198
    %v288 = vunpack.c.l.b16 %v199
    %v289 = vunpack.c.l.b16 %v200
    %v290 = vunpack.c.h.b16 %v200
    %v291 = vunpack.c.l.b16 %v201
    %v292 = vunpack.c.l.b16 %v202
    %v293 = vunpack.c.h.b16 %v202
    %v294 = vunpack.c.l.b16 %v203
    %v295 = vunpack.c.l.b16 %v204
    %v296 = vunpack.c.h.b16 %v204
    %v297 = vunpack.c.l.b16 %v205
    %v298 = vunpack.c.l.b16 %v206
    %v299 = vunpack.c.h.b16 %v206
    %v300 = vunpack.c.l.b16 %v207
    %v301 = vunpack.c.l.b16 %v208
    %v302 = vunpack.c.h.b16 %v208
    %v303 = vunpack.c.l.b16 %v209
    %v304 = vpack.c.b16 %v259, %v256
    %v305 = vpack.c.b16 %v260, %v257
    %v306 = vpack.c.b16 %v261, %v258
    %v307 = vpack.c.b16 %v265, %v262
    %v308 = vpack.c.b16 %v266, %v263
    %v309 = vpack.c.b16 %v267, %v264
    %v310 = vpack.c.b16 %v271, %v268
    %v311 = vpack.c.b16 %v272, %v269
    %v312 = vpack.c.b16 %v273, %v270
    %v313 = vpack.c.b16 %v277, %v274
    %v314 = vpack.c.b16 %v278, %v275
    %v315 = vpack.c.b16 %v279, %v276
    %v316 = vpack.c.b16 %v283, %v280
    %v317 = vpack.c.b16 %v284, %v281
    %v318 = vpack.c.b16 %v285, %v282
    %v319 = vpack.c.b16 %v289, %v286
    %v320 = vpack.c.b16 %v290, %v287
    %v321 = vpack.c.b16 %v291, %v288
    %v322 = vpack.c.b16 %v295, %v292
    %v323 = vpack.c.b16 %v296, %v293
    %v324 = vpack.c.b16 %v297, %v294
    %v325 = vpack.c.b16 %v301, %v298
    %v326 = vpack.c.b16 %v302, %v299
    %v327 = vpack.c.b16 %v303, %v300
    %352 = vmatpush.bf16.msra.mxu0 %v325
    %353 = vmatpush.bf16.msra.mxu0 %v322
    %354 = vmatpush.bf16.msra.mxu0 %v319
    %355 = vmatpush.bf16.msra.mxu0 %v316
    %356 = vmatpush.bf16.msra.mxu0 %v313
    %357 = vmatpush.bf16.msra.mxu0 %v310
    %358 = vmatpush.bf16.msra.mxu0 %v307
    %359 = vmatpush.bf16.msra.mxu0 %v304
    %360 = vmatmul.bf16.gmra.mxu0 %v222
    %v361 = vpop.f32.mrf.mxu0
    %v362 = vadd.f32 %v212, %v361
    %v363 = vpop.f32.mrf.mxu0
    %v364 = vadd.f32 %v212, %v363
    %365 = vdwg.mxu0
    %366 = vmatpush.bf16.msra.mxu0 %v326
    %367 = vmatpush.bf16.msra.mxu0 %v323
    %368 = vmatpush.bf16.msra.mxu0 %v320
    %369 = vmatpush.bf16.msra.mxu0 %v317
    %370 = vmatpush.bf16.msra.mxu0 %v314
    %371 = vmatpush.bf16.msra.mxu0 %v311
    %372 = vmatpush.bf16.msra.mxu0 %v308
    %373 = vmatpush.bf16.msra.mxu0 %v305
    %374 = vmatmul.bf16.gmra.mxu0 %v222
    %v375 = vpop.f32.mrf.mxu0
    %v376 = vadd.f32 %v213, %v375
    %v377 = vpop.f32.mrf.mxu0
    %v378 = vadd.f32 %v213, %v377
    %379 = vdwg.mxu0
    %380 = vmatpush.bf16.msra.mxu0 %v327
    %381 = vmatpush.bf16.msra.mxu0 %v324
    %382 = vmatpush.bf16.msra.mxu0 %v321
    %383 = vmatpush.bf16.msra.mxu0 %v318
    %384 = vmatpush.bf16.msra.mxu0 %v315
    %385 = vmatpush.bf16.msra.mxu0 %v312
    %386 = vmatpush.bf16.msra.mxu0 %v309
    %387 = vmatpush.bf16.msra.mxu0 %v306
    %388 = vmatmul.bf16.gmra.mxu0 %v222
    %v389 = vpop.f32.mrf.mxu0
    %v390 = vadd.f32 %v214, %v389
    %v391 = vpop.f32.mrf.mxu0
    %v392 = vadd.f32 %v214, %v391
    %393 = vdwg.mxu0
    %v394 = vpack.c.bf16 %v376, %v362
    %v395 = vpack.c.bf16 %v390, %v390
    %v396 = vpack.c.bf16 %v378, %v364
    %v397 = vpack.c.bf16 %v392, %v392
    %v400 = vrot.slane %v394, 4
    %v401 = vrot.slane %v396, 4
    %v404 = vld [vmem:[#allocation6] sm:$0x1]
    %v405 = vld [vmem:[#allocation6 + $0x1] sm:$0x1]
    %v408 = vperm.slane %v404, 0
    %v409 = vperm.slane %v405, 0
    %412 = vmatpush.bf16.xpose.msra.mxu0 0
    %413 = vmatpush.bf16.xpose.msra.mxu0 0
    %414 = vmatpush.bf16.xpose.msra.mxu0 0
    %415 = vmatpush.bf16.xpose.msra.mxu0 0
    %416 = vmatpush.bf16.xpose.msra.mxu0 0
    %417 = vmatpush.bf16.xpose.msra.mxu0 0
    %418 = vmatpush.bf16.xpose.msra.mxu0 0
    %419 = vmatpush.bf16.xpose.msra.mxu0 %v400
    %420 = vmatmul.bf16.gmra.mxu0 %v394
    %v421 = vpop.f32.mrf.mxu0
    %v422 = vadd.f32 %v408, %v421
    %v423 = vpop.f32.mrf.mxu0
    %424 = vdwg.mxu0
    %425 = vmatpush.bf16.xpose.msra.mxu0 0
    %426 = vmatpush.bf16.xpose.msra.mxu0 0
    %427 = vmatpush.bf16.xpose.msra.mxu0 0
    %428 = vmatpush.bf16.xpose.msra.mxu0 0
    %429 = vmatpush.bf16.xpose.msra.mxu0 0
    %430 = vmatpush.bf16.xpose.msra.mxu0 0
    %431 = vmatpush.bf16.xpose.msra.mxu0 0
    %432 = vmatpush.bf16.xpose.msra.mxu0 %v401
    %433 = vmatmul.bf16.gmra.mxu0 %v396
    %v434 = vpop.f32.mrf.mxu0
    %v435 = vadd.f32 %v409, %v434
    %v436 = vpop.f32.mrf.mxu0
    %437 = vdwg.mxu0
    %vm438 = vcmask 64512
    %v439 = vsel %vm438, %v422, -inf
    %440 = vmax.xlane.f32.xlu0 %v439
    %v441 = vpop.xlane.xlu0 %440
    %v442 = vsel %vm438, %v435, -inf
    %443 = vmax.xlane.f32.xlu0 %v442
    %v444 = vpop.xlane.xlu0 %443
    %v445 = vsub.f32 %v422, %v441
    %v446 = vsub.f32 %v435, %v444
    %v447 = vmul.f32 %v445, 1.442695
    %v448 = vpow.pop %v447
    %v449 = vmul.f32 %v446, 1.442695
    %v450 = vpow.pop %v449
    %v451 = vsel %vm438, %v448, 0.0
    %452 = vadd.xlane.f32.xlu0 %v451
    %v453 = vpop.xlane.xlu0 %452
    %v454 = vsel %vm438, %v450, 0.0
    %455 = vadd.xlane.f32.xlu0 %v454
    %v456 = vpop.xlane.xlu0 %455
    %v457 = vrcp.pop %v453
    %v458 = vrcp.pop %v456
    %v459 = vmul.f32 %v448, %v457
    %v460 = vmul.f32 %v450, %v458
    %v461 = vpack.c.bf16 %v459, %v459
    %v462 = vpack.c.bf16 %v460, %v460
    %v464 = vsel %vm438, %v461, 0
    %vm466 = vcmask 1043456
    %v468 = vsel %vm466, %v395, 0
    %470 = vmatpush.bf16.msra.mxu0 0
    %471 = vmatpush.bf16.msra.mxu0 0
    %472 = vmatpush.bf16.msra.mxu0 0
    %473 = vmatpush.bf16.msra.mxu0 0
    %474 = vmatpush.bf16.msra.mxu0 0
    %475 = vmatpush.bf16.msra.mxu0 0
    %476 = vmatpush.bf16.msra.mxu0 0
    %477 = vmatpush.bf16.msra.mxu0 %v468
    %478 = vmatmul.bf16.gmra.mxu0 %v464
    %v479 = vpop.f32.mrf.mxu0
    %v480 = vadd.f32 0.0, %v479
    %v481 = vpop.f32.mrf.mxu0
    %482 = vdwg.mxu0
    %v484 = vsel %vm438, %v462, 0
    %v487 = vsel %vm466, %v397, 0
    %489 = vmatpush.bf16.msra.mxu0 0
    %490 = vmatpush.bf16.msra.mxu0 0
    %491 = vmatpush.bf16.msra.mxu0 0
    %492 = vmatpush.bf16.msra.mxu0 0
    %493 = vmatpush.bf16.msra.mxu0 0
    %494 = vmatpush.bf16.msra.mxu0 0
    %495 = vmatpush.bf16.msra.mxu0 0
    %496 = vmatpush.bf16.msra.mxu0 %v487
    %497 = vmatmul.bf16.gmra.mxu0 %v484
    %v498 = vpop.f32.mrf.mxu0
    %v499 = vadd.f32 0.0, %v498
    %v500 = vpop.f32.mrf.mxu0
    %501 = vdwg.mxu0
    %v502 = vpack.c.bf16 %v499, %v480
    %v503 = vld [vmem:[#allocation11] sm:$0xf]
    %v504 = vld [vmem:[#allocation11 + $0x4] sm:$0xf]
    %v505 = vld [vmem:[#allocation11 + $0x8] sm:$0xf]
    %v506 = vld [vmem:[#allocation11 + $0xc] sm:$0xf]
    %v507 = vld [vmem:[#allocation11 + $0x10] sm:$0xf]
    %v508 = vld [vmem:[#allocation11 + $0x14] sm:$0xf]
    %v509 = vld [vmem:[#allocation11 + $0x18] sm:$0xf]
    %v510 = vld [vmem:[#allocation11 + $0x1c] sm:$0xf]
    %v511 = vld [vmem:[#allocation11 + $0x20] sm:$0xf]
    %v512 = vld [vmem:[#allocation11 + $0x24] sm:$0xf]
    %v513 = vld [vmem:[#allocation11 + $0x28] sm:$0xf]
    %v514 = vld [vmem:[#allocation11 + $0x2c] sm:$0xf]
    %v515 = vld [vmem:[#allocation11 + $0x30] sm:$0xf]
    %v516 = vld [vmem:[#allocation11 + $0x34] sm:$0xf]
    %v517 = vld [vmem:[#allocation11 + $0x38] sm:$0xf]
    %v518 = vld [vmem:[#allocation11 + $0x3c] sm:$0xf]
    %v519 = vld [vmem:[#allocation12] sm:$0x1]
    %v521 = vperm.slane %v519, 0
    %v539 = vunpack.c.l.b16 %v503
    %v540 = vunpack.c.l.b16 %v504
    %v541 = vunpack.c.l.b16 %v505
    %v542 = vunpack.c.l.b16 %v506
    %v543 = vunpack.c.l.b16 %v507
    %v544 = vunpack.c.l.b16 %v508
    %v545 = vunpack.c.l.b16 %v509
    %v546 = vunpack.c.l.b16 %v510
    %v547 = vunpack.c.l.b16 %v511
    %v548 = vunpack.c.l.b16 %v512
    %v549 = vunpack.c.l.b16 %v513
    %v550 = vunpack.c.l.b16 %v514
    %v551 = vunpack.c.l.b16 %v515
    %v552 = vunpack.c.l.b16 %v516
    %v553 = vunpack.c.l.b16 %v517
    %v554 = vunpack.c.l.b16 %v518
    %v555 = vpack.c.b16 %v540, %v539
    %v556 = vpack.c.b16 %v542, %v541
    %v557 = vpack.c.b16 %v544, %v543
    %v558 = vpack.c.b16 %v546, %v545
    %v559 = vpack.c.b16 %v548, %v547
    %v560 = vpack.c.b16 %v550, %v549
    %v561 = vpack.c.b16 %v552, %v551
    %v562 = vpack.c.b16 %v554, %v553
    %571 = vmatpush.bf16.msra.mxu0 %v562
    %572 = vmatpush.bf16.msra.mxu0 %v561
    %573 = vmatpush.bf16.msra.mxu0 %v560
    %574 = vmatpush.bf16.msra.mxu0 %v559
    %575 = vmatpush.bf16.msra.mxu0 %v558
    %576 = vmatpush.bf16.msra.mxu0 %v557
    %577 = vmatpush.bf16.msra.mxu0 %v556
    %578 = vmatpush.bf16.msra.mxu0 %v555
    %579 = vmatmul.bf16.gmra.mxu0 %v502
    %v580 = vpop.f32.mrf.mxu0
    %v581 = vadd.f32 %v521, %v580
    %v582 = vpop.f32.mrf.mxu0
    %v583 = vadd.f32 %v521, %v582
    %584 = vdwg.mxu0
    %v585 = vld [vmem:[%s11] sm:$0xf]
    %v586 = vadd.f32 %v176, %v581
    %v587 = vadd.f32 %v177, %v583
    %588 = vadd.xlane.f32.xlu0 %v586
    %v589 = vpop.xlane.xlu0 %588
    %590 = vadd.xlane.f32.xlu0 %v587
    %v591 = vpop.xlane.xlu0 %590
    %v592 = vrcp.pop 128.0
    %v593 = vmul.f32 128.0, %v592
    %v594 = vsub.f32 1.0, %v593
    %v595 = vmul.f32 %v592, %v594
    %v596 = vadd.f32 %v592, %v595
    %vm597 = vweird.f32 %v592
    %v598 = vsel %vm597, %v592, %v596
    %v599 = vmul.f32 %v589, %v598
    %v600 = vmul.f32 %v591, %v598
    %v601 = vsub.f32 %v586, %v599
    %v602 = vsub.f32 %v587, %v600
    %v603 = vmul.f32 %v601, %v601
    %v604 = vmul.f32 %v602, %v602
    %605 = vadd.xlane.f32.xlu0 %v603
    %v606 = vpop.xlane.xlu0 %605
    %607 = vadd.xlane.f32.xlu0 %v604
    %v608 = vpop.xlane.xlu0 %607
    %v609 = vmul.f32 %v606, %v598
    %v610 = vmul.f32 %v608, %v598
    %v611 = vadd.f32 %v609, 1e-06
    %v612 = vadd.f32 %v610, 1e-06
    %v613 = vrsqrt.pop %v611
    %v614 = vmul.f32 %v613, %v611
    %v615 = vmul.f32 %v614, %v613
    %v616 = vmul.f32 0.5, %v615
    %v617 = vsub.f32 1.5, %v616
    %v618 = vmul.f32 %v613, %v617
    %vm619 = vweird.f32 %v611
    %vm620 = vweird.f32 %v613
    %vm621 = vmor %vm619, %vm620
    %v622 = vsel %vm621, %v613, %v618
    %v623 = vrsqrt.pop %v612
    %v624 = vmul.f32 %v623, %v612
    %v625 = vmul.f32 %v624, %v623
    %v626 = vmul.f32 0.5, %v625
    %v627 = vsub.f32 1.5, %v626
    %v628 = vmul.f32 %v623, %v627
    %vm629 = vweird.f32 %v612
    %vm630 = vweird.f32 %v623
    %vm631 = vmor %vm629, %vm630
    %v632 = vsel %vm631, %v623, %v628
    %v633 = vmul.f32 %v601, %v622
    %v634 = vmul.f32 %v602, %v632
    %v635 = vperm.slane %v585, 0
    %v636 = vmul.f32 %v633, %v635
    %v637 = vmul.f32 %v634, %v635
    %v638 = vperm.slane %v585, 1
    %v639 = vadd.f32 %v636, %v638
    %v640 = vadd.f32 %v637, %v638
    %v641 = vpack.c.bf16 %v640, %v639
    %v642 = vld [vmem:[#allocation14] sm:$0xff]
    %v643 = vld [vmem:[#allocation14 + $0x8] sm:$0xff]
    %v644 = vld [vmem:[#allocation14 + $0x10] sm:$0xff]
    %v645 = vld [vmem:[#allocation14 + $0x18] sm:$0xff]
    %v646 = vld [vmem:[#allocation14 + $0x20] sm:$0xff]
    %v647 = vld [vmem:[#allocation14 + $0x28] sm:$0xff]
    %v648 = vld [vmem:[#allocation14 + $0x30] sm:$0xff]
    %v649 = vld [vmem:[#allocation14 + $0x38] sm:$0xff]
    %v650 = vld [vmem:[#allocation14 + $0x40] sm:$0xff]
    %v651 = vld [vmem:[#allocation14 + $0x48] sm:$0xff]
    %v652 = vld [vmem:[#allocation14 + $0x50] sm:$0xff]
    %v653 = vld [vmem:[#allocation14 + $0x58] sm:$0xff]
    %v654 = vld [vmem:[#allocation14 + $0x60] sm:$0xff]
    %v655 = vld [vmem:[#allocation14 + $0x68] sm:$0xff]
    %v656 = vld [vmem:[#allocation14 + $0x70] sm:$0xff]
    %v657 = vld [vmem:[#allocation14 + $0x78] sm:$0xff]
    %v658 = vld [vmem:[%s8] sm:$0x3]
    %v660 = vperm.slane %v658, 0
    %v661 = vperm.slane %v658, 1
    %v680 = vunpack.c.l.b16 %v642
    %v681 = vunpack.c.h.b16 %v642
    %v682 = vunpack.c.l.b16 %v643
    %v683 = vunpack.c.h.b16 %v643
    %v684 = vunpack.c.l.b16 %v644
    %v685 = vunpack.c.h.b16 %v644
    %v686 = vunpack.c.l.b16 %v645
    %v687 = vunpack.c.h.b16 %v645
    %v688 = vunpack.c.l.b16 %v646
    %v689 = vunpack.c.h.b16 %v646
    %v690 = vunpack.c.l.b16 %v647
    %v691 = vunpack.c.h.b16 %v647
    %v692 = vunpack.c.l.b16 %v648
    %v693 = vunpack.c.h.b16 %v648
    %v694 = vunpack.c.l.b16 %v649
    %v695 = vunpack.c.h.b16 %v649
    %v696 = vunpack.c.l.b16 %v650
    %v697 = vunpack.c.h.b16 %v650
    %v698 = vunpack.c.l.b16 %v651
    %v699 = vunpack.c.h.b16 %v651
    %v700 = vunpack.c.l.b16 %v652
    %v701 = vunpack.c.h.b16 %v652
    %v702 = vunpack.c.l.b16 %v653
    %v703 = vunpack.c.h.b16 %v653
    %v704 = vunpack.c.l.b16 %v654
    %v705 = vunpack.c.h.b16 %v654
    %v706 = vunpack.c.l.b16 %v655
    %v707 = vunpack.c.h.b16 %v655
    %v708 = vunpack.c.l.b16 %v656
    %v709 = vunpack.c.h.b16 %v656
    %v710 = vunpack.c.l.b16 %v657
    %v711 = vunpack.c.h.b16 %v657
    %v712 = vpack.c.b16 %v682, %v680
    %v713 = vpack.c.b16 %v683, %v681
    %v714 = vpack.c.b16 %v686, %v684
    %v715 = vpack.c.b16 %v687, %v685
    %v716 = vpack.c.b16 %v690, %v688
    %v717 = vpack.c.b16 %v691, %v689
    %v718 = vpack.c.b16 %v694, %v692
    %v719 = vpack.c.b16 %v695, %v693
    %v720 = vpack.c.b16 %v698, %v696
    %v721 = vpack.c.b16 %v699, %v697
    %v722 = vpack.c.b16 %v702, %v700
    %v723 = vpack.c.b16 %v703, %v701
    %v724 = vpack.c.b16 %v706, %v704
    %v725 = vpack.c.b16 %v707, %v705
    %v726 = vpack.c.b16 %v710, %v708
    %v727 = vpack.c.b16 %v711, %v709
    %744 = vmatpush.bf16.msra.mxu0 %v726
    %745 = vmatpush.bf16.msra.mxu0 %v724
    %746 = vmatpush.bf16.msra.mxu0 %v722
    %747 = vmatpush.bf16.msra.mxu0 %v720
    %748 = vmatpush.bf16.msra.mxu0 %v718
    %749 = vmatpush.bf16.msra.mxu0 %v716
    %750 = vmatpush.bf16.msra.mxu0 %v714
    %751 = vmatpush.bf16.msra.mxu0 %v712
    %752 = vmatmul.bf16.gmra.mxu0 %v641
    %v753 = vpop.f32.mrf.mxu0
    %v754 = vadd.f32 %v660, %v753
    %v755 = vpop.f32.mrf.mxu0
    %v756 = vadd.f32 %v660, %v755
    %757 = vdwg.mxu0
    %758 = vmatpush.bf16.msra.mxu0 %v727
    %759 = vmatpush.bf16.msra.mxu0 %v725
    %760 = vmatpush.bf16.msra.mxu0 %v723
    %761 = vmatpush.bf16.msra.mxu0 %v721
    %762 = vmatpush.bf16.msra.mxu0 %v719
    %763 = vmatpush.bf16.msra.mxu0 %v717
    %764 = vmatpush.bf16.msra.mxu0 %v715
    %765 = vmatpush.bf16.msra.mxu0 %v713
    %766 = vmatmul.bf16.gmra.mxu0 %v641
    %v767 = vpop.f32.mrf.mxu0
    %v768 = vadd.f32 %v661, %v767
    %v769 = vpop.f32.mrf.mxu0
    %v770 = vadd.f32 %v661, %v769
    %771 = vdwg.mxu0
    %v772 = vmul.f32 %v754, %v754
    %v773 = vmul.f32 %v768, %v768
    %v774 = vmul.f32 %v756, %v756
    %v775 = vmul.f32 %v770, %v770
    %v776 = vmul.f32 %v754, %v772
    %v777 = vmul.f32 %v768, %v773
    %v778 = vmul.f32 %v756, %v774
    %v779 = vmul.f32 %v770, %v775
    %v780 = vmul.f32 %v776, 0.044715
    %v781 = vmul.f32 %v777, 0.044715
    %v782 = vmul.f32 %v778, 0.044715
    %v783 = vmul.f32 %v779, 0.044715
    %v784 = vadd.f32 %v754, %v780
    %v785 = vadd.f32 %v768, %v781
    %v786 = vadd.f32 %v756, %v782
    %v787 = vadd.f32 %v770, %v783
    %v788 = vmul.f32 %v784, 0.7978846
    %v789 = vmul.f32 %v785, 0.7978846
    %v790 = vmul.f32 %v786, 0.7978846
    %v791 = vmul.f32 %v787, 0.7978846
    %v792 = vtanh.pop %v788
    %v793 = vtanh.pop %v789
    %v794 = vtanh.pop %v790
    %v795 = vtanh.pop %v791
    %v796 = vadd.f32 %v792, 1.0
    %v797 = vadd.f32 %v793, 1.0
    %v798 = vadd.f32 %v794, 1.0
    %v799 = vadd.f32 %v795, 1.0
    %v800 = vmul.f32 %v796, 0.5
    %v801 = vmul.f32 %v797, 0.5
    %v802 = vmul.f32 %v798, 0.5
    %v803 = vmul.f32 %v799, 0.5
    %v804 = vmul.f32 %v754, %v800
    %v805 = vmul.f32 %v768, %v801
    %v806 = vmul.f32 %v756, %v802
    %v807 = vmul.f32 %v770, %v803
    %v808 = vpack.c.bf16 %v806, %v804
    %v809 = vpack.c.bf16 %v807, %v805
    %v810 = vld [vmem:[#allocation15] sm:$0xf]
    %v811 = vld [vmem:[#allocation15 + $0x4] sm:$0xf]
    %v812 = vld [vmem:[#allocation15 + $0x8] sm:$0xf]
    %v813 = vld [vmem:[#allocation15 + $0xc] sm:$0xf]
    %v814 = vld [vmem:[#allocation15 + $0x10] sm:$0xf]
    %v815 = vld [vmem:[#allocation15 + $0x14] sm:$0xf]
    %v816 = vld [vmem:[#allocation15 + $0x18] sm:$0xf]
    %v817 = vld [vmem:[#allocation15 + $0x1c] sm:$0xf]
    %v818 = vld [vmem:[#allocation15 + $0x20] sm:$0xf]
    %v819 = vld [vmem:[#allocation15 + $0x24] sm:$0xf]
    %v820 = vld [vmem:[#allocation15 + $0x28] sm:$0xf]
    %v821 = vld [vmem:[#allocation15 + $0x2c] sm:$0xf]
    %v822 = vld [vmem:[#allocation15 + $0x30] sm:$0xf]
    %v823 = vld [vmem:[#allocation15 + $0x34] sm:$0xf]
    %v824 = vld [vmem:[#allocation15 + $0x38] sm:$0xf]
    %v825 = vld [vmem:[#allocation15 + $0x3c] sm:$0xf]
    %v826 = vld [vmem:[#allocation15 + $0x40] sm:$0xf]
    %v827 = vld [vmem:[#allocation15 + $0x44] sm:$0xf]
    %v828 = vld [vmem:[#allocation15 + $0x48] sm:$0xf]
    %v829 = vld [vmem:[#allocation15 + $0x4c] sm:$0xf]
    %v830 = vld [vmem:[#allocation15 + $0x50] sm:$0xf]
    %v831 = vld [vmem:[#allocation15 + $0x54] sm:$0xf]
    %v832 = vld [vmem:[#allocation15 + $0x58] sm:$0xf]
    %v833 = vld [vmem:[#allocation15 + $0x5c] sm:$0xf]
    %v834 = vld [vmem:[#allocation15 + $0x60] sm:$0xf]
    %v835 = vld [vmem:[#allocation15 + $0x64] sm:$0xf]
    %v836 = vld [vmem:[#allocation15 + $0x68] sm:$0xf]
    %v837 = vld [vmem:[#allocation15 + $0x6c] sm:$0xf]
    %v838 = vld [vmem:[#allocation15 + $0x70] sm:$0xf]
    %v839 = vld [vmem:[#allocation15 + $0x74] sm:$0xf]
    %v840 = vld [vmem:[#allocation15 + $0x78] sm:$0xf]
    %v841 = vld [vmem:[#allocation15 + $0x7c] sm:$0xf]
    %v842 = vld [vmem:[%s10] sm:$0x1]
    %v844 = vperm.slane %v842, 0
    %v878 = vunpack.c.l.b16 %v810
    %v879 = vunpack.c.l.b16 %v811
    %v880 = vunpack.c.l.b16 %v812
    %v881 = vunpack.c.l.b16 %v813
    %v882 = vunpack.c.l.b16 %v814
    %v883 = vunpack.c.l.b16 %v815
    %v884 = vunpack.c.l.b16 %v816
    %v885 = vunpack.c.l.b16 %v817
    %v886 = vunpack.c.l.b16 %v818
    %v887 = vunpack.c.l.b16 %v819
    %v888 = vunpack.c.l.b16 %v820
    %v889 = vunpack.c.l.b16 %v821
    %v890 = vunpack.c.l.b16 %v822
    %v891 = vunpack.c.l.b16 %v823
    %v892 = vunpack.c.l.b16 %v824
    %v893 = vunpack.c.l.b16 %v825
    %v894 = vunpack.c.l.b16 %v826
    %v895 = vunpack.c.l.b16 %v827
    %v896 = vunpack.c.l.b16 %v828
    %v897 = vunpack.c.l.b16 %v829
    %v898 = vunpack.c.l.b16 %v830
    %v899 = vunpack.c.l.b16 %v831
    %v900 = vunpack.c.l.b16 %v832
    %v901 = vunpack.c.l.b16 %v833
    %v902 = vunpack.c.l.b16 %v834
    %v903 = vunpack.c.l.b16 %v835
    %v904 = vunpack.c.l.b16 %v836
    %v905 = vunpack.c.l.b16 %v837
    %v906 = vunpack.c.l.b16 %v838
    %v907 = vunpack.c.l.b16 %v839
    %v908 = vunpack.c.l.b16 %v840
    %v909 = vunpack.c.l.b16 %v841
    %v910 = vpack.c.b16 %v879, %v878
    %v911 = vpack.c.b16 %v881, %v880
    %v912 = vpack.c.b16 %v883, %v882
    %v913 = vpack.c.b16 %v885, %v884
    %v914 = vpack.c.b16 %v887, %v886
    %v915 = vpack.c.b16 %v889, %v888
    %v916 = vpack.c.b16 %v891, %v890
    %v917 = vpack.c.b16 %v893, %v892
    %v918 = vpack.c.b16 %v895, %v894
    %v919 = vpack.c.b16 %v897, %v896
    %v920 = vpack.c.b16 %v899, %v898
    %v921 = vpack.c.b16 %v901, %v900
    %v922 = vpack.c.b16 %v903, %v902
    %v923 = vpack.c.b16 %v905, %v904
    %v924 = vpack.c.b16 %v907, %v906
    %v925 = vpack.c.b16 %v909, %v908
    %942 = vmatpush.bf16.msra.mxu0 %v917
    %943 = vmatpush.bf16.msra.mxu0 %v916
    %944 = vmatpush.bf16.msra.mxu0 %v915
    %945 = vmatpush.bf16.msra.mxu0 %v914
    %946 = vmatpush.bf16.msra.mxu0 %v913
    %947 = vmatpush.bf16.msra.mxu0 %v912
    %948 = vmatpush.bf16.msra.mxu0 %v911
    %949 = vmatpush.bf16.msra.mxu0 %v910
    %950 = vmatmul.bf16.gmra.mxu0 %v808
    %v951 = vpop.f32.mrf.mxu0
    %v952 = vadd.f32 %v844, %v951
    %v953 = vpop.f32.mrf.mxu0
    %v954 = vadd.f32 %v844, %v953
    %955 = vdwg.mxu0
    %956 = vmatpush.bf16.msra.mxu0 %v925
    %957 = vmatpush.bf16.msra.mxu0 %v924
    %958 = vmatpush.bf16.msra.mxu0 %v923
    %959 = vmatpush.bf16.msra.mxu0 %v922
    %960 = vmatpush.bf16.msra.mxu0 %v921
    %961 = vmatpush.bf16.msra.mxu0 %v920
    %962 = vmatpush.bf16.msra.mxu0 %v919
    %963 = vmatpush.bf16.msra.mxu0 %v918
    %964 = vmatmul.bf16.gmra.mxu0 %v809
    %v965 = vpop.f32.mrf.mxu0
    %v966 = vadd.f32 %v952, %v965
    %v967 = vpop.f32.mrf.mxu0
    %v968 = vadd.f32 %v954, %v967
    %969 = vdwg.mxu0
    %v970 = vadd.f32 %v639, %v966
    %v971 = vadd.f32 %v640, %v968
    %972 = vadd.xlane.f32.xlu0 %v970
    %v973 = vpop.xlane.xlu0 %972
    %974 = vadd.xlane.f32.xlu0 %v971
    %v975 = vpop.xlane.xlu0 %974
    %v976 = vmul.f32 %v973, %v598
    %v977 = vmul.f32 %v975, %v598
    %v978 = vsub.f32 %v970, %v976
    %v979 = vsub.f32 %v971, %v977
    %v980 = vmul.f32 %v978, %v978
    %v981 = vmul.f32 %v979, %v979
    %982 = vadd.xlane.f32.xlu0 %v980
    %v983 = vpop.xlane.xlu0 %982
    %984 = vadd.xlane.f32.xlu0 %v981
    %v985 = vpop.xlane.xlu0 %984
    %v986 = vmul.f32 %v983, %v598
    %v987 = vmul.f32 %v985, %v598
    %v988 = vadd.f32 %v986, 1e-06
    %v989 = vadd.f32 %v987, 1e-06
    %v990 = vrsqrt.pop %v988
    %v991 = vmul.f32 %v990, %v988
    %v992 = vmul.f32 %v991, %v990
    %v993 = vmul.f32 0.5, %v992
    %v994 = vsub.f32 1.5, %v993
    %v995 = vmul.f32 %v990, %v994
    %vm996 = vweird.f32 %v988
    %vm997 = vweird.f32 %v990
    %vm998 = vmor %vm996, %vm997
    %v999 = vsel %vm998, %v990, %v995
    %v1000 = vrsqrt.pop %v989
    %v1001 = vmul.f32 %v1000, %v989
    %v1002 = vmul.f32 %v1001, %v1000
    %v1003 = vmul.f32 0.5, %v1002
    %v1004 = vsub.f32 1.5, %v1003
    %v1005 = vmul.f32 %v1000, %v1004
    %vm1006 = vweird.f32 %v989
    %vm1007 = vweird.f32 %v1000
    %vm1008 = vmor %vm1006, %vm1007
    %v1009 = vsel %vm1008, %v1000, %v1005
    %v1010 = vmul.f32 %v978, %v999
    %v1011 = vmul.f32 %v979, %v1009
    %v1012 = vperm.slane %v585, 2
    %v1013 = vmul.f32 %v1010, %v1012
    %v1014 = vmul.f32 %v1011, %v1012
    %v1015 = vperm.slane %v585, 3
    %v1016 = vadd.f32 %v1013, %v1015
    %v1017 = vadd.f32 %v1014, %v1015
    %v1018 = vld [vmem:[%s12] sm:$0x1]
    %s1019 = sld [smem:[#allocation2]]
    %v1020 = vstv %s1019
    %1021 = vmatpush.xpose.msra.mxu0 0.0
    %1022 = vmatpush.xpose.msra.mxu0 0.0
    %1023 = vmatpush.xpose.msra.mxu0 0.0
    %1024 = vmatpush.xpose.msra.mxu0 0.0
    %1025 = vmatpush.xpose.msra.mxu0 0.0
    %1026 = vmatpush.xpose.msra.mxu0 0.0
    %1027 = vmatpush.xpose.msra.mxu0 0.0
    %1028 = vmatpush.xpose.msra.mxu0 0.0
    %1029 = vmatpush.xpose.msra.mxu0 0.0
    %1030 = vmatpush.xpose.msra.mxu0 0.0
    %1031 = vmatpush.xpose.msra.mxu0 0.0
    %1032 = vmatpush.xpose.msra.mxu0 0.0
    %1033 = vmatpush.xpose.msra.mxu0 0.0
    %1034 = vmatpush.xpose.msra.mxu0 0.0
    %1035 = vmatpush.xpose.msra.mxu0 %v1017
    %1036 = vmatpush.xpose.msra.mxu0 %v1016
    %1037 = vmatmul.f32.gmra.mxu0 %v1018
    %v1038 = vpop.f32.mrf.mxu0
    %v1039 = vadd.f32 %v1020, %v1038
    %1040 = vdwg.mxu0
    %v1041 = vxor.u32 %v1039, 2147483648
    %v1042 = vmul.f32 %v1041, 1.442695
    %v1043 = vpow.pop %v1042
    %v1044 = vadd.f32 %v1043, 1.0
    %v1045 = vrcp.pop %v1044
    %v1046 = vmul.f32 %v1044, %v1045
    %v1047 = vsub.f32 1.0, %v1046
    %v1048 = vmul.f32 %v1045, %v1047
    %v1049 = vadd.f32 %v1045, %v1048
    %vm1050 = vweird.f32 %v1044
    %vm1051 = vweird.f32 %v1045
    %vm1052 = vmor %vm1050, %vm1051
    %v1053 = vsel %vm1052, %v1045, %v1049
    %v1054 = vand.u32 2147483647, %v1044
    %vm1055 = vcmp.eq.f32.partialorder %v1054, 8.507059e+37
    %v1056 = vand.u32 %v1044, 2147483648
    %v1057 = vor.u32 1.1754944e-38, %v1056
    %v1058 = vsel %vm1055, %v1057, %v1053
    %v1059 = vmul.f32 1.0, %v1058
    %vm1060 = vcmask 122880
    %1061 = vst.msk [vmem:[#allocation17] sm:$0x1] %vm1060, %v1059
    %v1062 = vld [vmem:[#allocation8] sm:$0x1]
    %v1063 = vmax.f32 %v1039, 0.0
    %v1064 = vmul.f32 %v1039, %v1062
    %v1065 = vsub.f32 %v1063, %v1064
    %v1066 = vand.u32 2147483647, %v1039
    %v1067 = vsub.f32 0.0, %v1066
    %v1068 = vmul.f32 %v1067, 1.442695
    %v1069 = vpow.pop %v1068
    %v1070 = vadd.f32 %v1069, 1.0
    %v1071 = vlog2.pop %v1070
    %v1072 = vmul.f32 %v1071, 0.6931472
    %v1073 = vmul.f32 -0.5, %v1069
    %v1074 = vadd.f32 %v1073, 1.0
    %v1075 = vmul.f32 %v1074, %v1069
    %v1076 = vand.u32 2147483647, %v1069
    %vm1077 = vcmp.lt.f32.partialorder %v1076, 0.0004427343
    %v1078 = vsel %vm1077, %v1075, %v1072
    %v1079 = vadd.f32 %v1065, %v1078
    %vm1080 = vcmp.ne.f32.partialorder %v1062, -100.0
    %v1081 = vsel %vm1080, %v1079, 0.0
    %1082 = vst.msk [vmem:[#allocation18] sm:$0x1] %vm1060, %v1081
    // Predicated region
    $region90: #{tpu_custom_call.1} parent=1 // pred_check
      _
    $region91: #{tpu_custom_call.1} parent=1 // pred_check_branch
      %1084 = sbr.rel (0) target = $region93
    $region92: #{tpu_custom_call.1} parent=1 // pred_region
      %1086 = vsyncadd [#allocation5], 0
      %s1088 = sshll.u32 [#allocation17], 4
      %s1089 = int_to_ptr.vmem [resolvable:$true] %s1088
      %s1090 = sshll.u32 %s14, 4
      %s1091 = int_to_ptr.hbm [resolvable:$true] %s1090
      %1093 = dma.vmem_to_hbm [thread:$0]  %s1089, 16, %s1091, [#allocation5]
    $region93: #{tpu_custom_call.1} parent=1 // pred_fallthru
      _
    // Predicated region
    $region94: #{tpu_custom_call.1} parent=1 // pred_check
      _
    $region95: #{tpu_custom_call.1} parent=1 // pred_check_branch
      %1095 = sbr.rel (0) target = $region97
    $region96: #{tpu_custom_call.1} parent=1 // pred_region
      %1097 = vsyncadd [#allocation19], 0
      %s1099 = sshll.u32 [#allocation18], 4
      %s1100 = int_to_ptr.vmem [resolvable:$true] %s1099
      %s1101 = sshll.u32 %s15, 4
      %s1102 = int_to_ptr.hbm [resolvable:$true] %s1101
      %1104 = dma.vmem_to_hbm [thread:$0]  %s1100, 16, %s1102, [#allocation19]
    $region97: #{tpu_custom_call.1} parent=1 // pred_fallthru
      _
    // Predicated region
    $region98: #{tpu_custom_call.1} parent=1 // pred_check
      _
    $region99: #{tpu_custom_call.1} parent=1 // pred_check_branch
      %1106 = sbr.rel (0) target = $region101
    $region100: #{tpu_custom_call.1} parent=1 // pred_region
      %1108 = dma.done [#allocation5], 16
    $region101: #{tpu_custom_call.1} parent=1 // pred_fallthru
      _
    // Predicated region
    $region102: #{tpu_custom_call.1} parent=1 // pred_check
      _
    $region103: #{tpu_custom_call.1} parent=1 // pred_check_branch
      %1110 = sbr.rel (0) target = $region105
    $region104: #{tpu_custom_call.1} parent=1 // pred_region
      %1112 = dma.done [#allocation19], 16
    $region105: #{tpu_custom_call.1} parent=1 // pred_fallthru
      _
    %1113 = vsyncpa [#allocation4], 1
    %1114 = vsyncpa [#allocation7], 1
    %1115 = vsyncpa [#allocation10], 1
    %1116 = vsyncpa [#allocation13], 1
    %1117 = vsyncpa [#allocation16], 1
    %1118 = vsyncpa [#allocation5], 1
    %1119 = vsyncpa [#allocation19], 1

// kernel: tpu_custom_call.1
$region0: #{tpu_custom_call.1}
  #allocation0 [shape = 'u32[]', space=smem, size = 0x4, offset = 0x4, fixed_abs, tag = 'smem constant byte address 0x4 - core index']
  #allocation1 [shape = 'u32[72,128]{1,0:T(1,128)}', space=vmem, size = 0x9000, scoped, tag = 'internal scratch']
  #allocation2 [shape = 'f32[1]{0:T(128)S(6)}', space=smem, size = 0x200, scoped, tag = 'scoped memory for tpu_custom_call.1']
  %s0 = inlined_call_operand.hbm [shape: bf16[2,8,128], index: 0, kind: input, shape index: {}]
  %s1 = inlined_call_operand.hbm [shape: f32[2,1,8], index: 1, kind: input, shape index: {}]
  %s2 = inlined_call_operand.hbm [shape: f32[1,16], index: 2, kind: input, shape index: {}]
  %s3 = inlined_call_operand.hbm [shape: bf16[128,384], index: 3, kind: input, shape index: {}]
  %s4 = inlined_call_operand.vmem [shape: f32[1,384], index: 4, kind: input, shape index: {}]
  %s5 = inlined_call_operand.hbm [shape: bf16[128,128], index: 5, kind: input, shape index: {}]
  %s6 = inlined_call_operand.hbm [shape: f32[1,128], index: 6, kind: input, shape index: {}]
  %s7 = inlined_call_operand.hbm [shape: bf16[128,256], index: 7, kind: input, shape index: {}]
  %s8 = inlined_call_operand.vmem [shape: f32[1,256], index: 8, kind: input, shape index: {}]
  %s9 = inlined_call_operand.hbm [shape: bf16[256,128], index: 9, kind: input, shape index: {}]
  %s10 = inlined_call_operand.vmem [shape: f32[1,128], index: 10, kind: input, shape index: {}]
  %s11 = inlined_call_operand.vmem [shape: f32[4,128], index: 11, kind: input, shape index: {}]
  %s12 = inlined_call_operand.vmem [shape: f32[1,128], index: 12, kind: input, shape index: {}]
  %s13 = inlined_call_operand.<no memory space> [shape: f32[1], index: 13, kind: input, shape index: {}]
  %s14 = inlined_call_operand.hbm [shape: f32[1,16], index: 14, kind: output, shape index: {0}]
  %s15 = inlined_call_operand.hbm [shape: f32[1,16], index: 15, kind: output, shape index: {1}]
  %16 = xla_tuple %s14, %s15
  %s17 = sld [smem:[#allocation0]]
  $region106: #{tpu_custom_call.1} parent=0
    _
  %s19 = ssub.s32 1, %s17
  %s20 = scalar_select 0, %s19, %s17
  %21 = sst [smem:[#allocation2]] %s13
  $region1: #{tpu_custom_call.1} parent=0
    #allocation3 [shape = 'u8[4096]{0}', space=vmem, size = 0x1000, scoped, tag = 'input window, operand 0, single buffered']
    #allocation4 [shape = 's32[1]{0}', space=sflag, size = 0x4, scoped, tag = 'scoped memory for tpu_custom_call.1']
    #allocation5 [shape = 's32[1]{0}', space=sflag, size = 0x4, scoped, tag = 'scoped memory for tpu_custom_call.1']
    #allocation6 [shape = 'u8[1024]{0}', space=vmem, size = 0x400, scoped, tag = 'input window, operand 1, single buffered']
    #allocation7 [shape = 's32[1]{0}', space=sflag, size = 0x4, scoped, tag = 'scoped memory for tpu_custom_call.1']
    #allocation8 [shape = 'u8[512]{0}', space=vmem, size = 0x400, scoped, tag = 'input window, operand 2, single buffered']
    #allocation9 [shape = 'u8[98304]{0}', space=vmem, size = 0x18000, scoped, tag = 'input window, operand 3, single buffered']
    #allocation10 [shape = 's32[1]{0}', space=sflag, size = 0x4, scoped, tag = 'scoped memory for tpu_custom_call.1']
    #allocation11 [shape = 'u8[32768]{0}', space=vmem, size = 0x8000, scoped, tag = 'input window, operand 5, single buffered']
    #allocation12 [shape = 'u8[512]{0}', space=vmem, size = 0x400, scoped, tag = 'input window, operand 6, single buffered']
    #allocation13 [shape = 's32[1]{0}', space=sflag, size = 0x4, scoped, tag = 'scoped memory for tpu_custom_call.1']
    #allocation14 [shape = 'u8[65536]{0}', space=vmem, size = 0x10000, scoped, tag = 'input window, operand 7, single buffered']
    #allocation15 [shape = 'u8[65536]{0}', space=vmem, size = 0x10000, scoped, tag = 'input window, operand 9, single buffered']
    #allocation16 [shape = 's32[1]{0}', space=sflag, size = 0x4, scoped, tag = 'scoped memory for tpu_custom_call.1']
    #allocation17 [shape = 'u8[512]{0}', space=vmem, size = 0x400, scoped, tag = 'output window, operand 0, single buffered']
    #allocation18 [shape = 'u8[512]{0}', space=vmem, size = 0x400, scoped, tag = 'output window, operand 1, single buffered']
    #allocation19 [shape = 's32[1]{0}', space=sflag, size = 0x4, scoped, tag = 'scoped memory for tpu_custom_call.1']
    %22 = vsyncpa [#allocation4], 0
    %23 = vsyncpa [#allocation7], 0
    %24 = vsyncpa [#allocation10], 0
    %25 = vsyncpa [#allocation13], 0
    %26 = vsyncpa [#allocation16], 0
    %27 = vsyncpa [#allocation5], 0
    %28 = vsyncpa [#allocation19], 0
    // Predicated region
    $region2: #{tpu_custom_call.1} parent=1 // pred_check
      _
    $region3: #{tpu_custom_call.1} parent=1 // pred_check_branch
      %30 = sbr.rel (0) target = $region5
    $region4: #{tpu_custom_call.1} parent=1 // pred_region
      %32 = vsyncadd [#allocation4], 0
      %s33 = sshll.u32 %s0, 4
      %s34 = int_to_ptr.hbm [resolvable:$true] %s33
      %s35 = sshll.u32 [#allocation3], 4
      %s36 = int_to_ptr.vmem [resolvable:$true] %s35
      %41 = dma.hbm_to_vmem [thread:$0]  %s34, 128, %s36, [#allocation4], 64, 64, 4
    $region5: #{tpu_custom_call.1} parent=1 // pred_fallthru
      _
    // Predicated region
    $region6: #{tpu_custom_call.1} parent=1 // pred_check
      _
    $region7: #{tpu_custom_call.1} parent=1 // pred_check_branch
      %43 = sbr.rel (0) target = $region9
    $region8: #{tpu_custom_call.1} parent=1 // pred_region
      %45 = vsyncadd [#allocation7], 0
      %s46 = sshll.u32 %s1, 4
      %s47 = int_to_ptr.hbm [resolvable:$true] %s46
      %s48 = sshll.u32 [#allocation6], 4
      %s49 = int_to_ptr.vmem [resolvable:$true] %s48
      %54 = dma.hbm_to_vmem [thread:$0]  %s47, 32, %s49, [#allocation7], 16, 16, 1
    $region9: #{tpu_custom_call.1} parent=1 // pred_fallthru
      _
    // Predicated region
    $region10: #{tpu_custom_call.1} parent=1 // pred_check
      _
    $region11: #{tpu_custom_call.1} parent=1 // pred_check_branch
      %56 = sbr.rel (0) target = $region13
    $region12: #{tpu_custom_call.1} parent=1 // pred_region
      %58 = vsyncadd [#allocation7], 0
      %s60 = sshll.u32 %s2, 4
      %s61 = int_to_ptr.hbm [resolvable:$true] %s60
      %s62 = sshll.u32 [#allocation8], 4
      %s63 = int_to_ptr.vmem [resolvable:$true] %s62
      %65 = dma.hbm_to_vmem [thread:$0]  %s61, 16, %s63, [#allocation7]
    $region13: #{tpu_custom_call.1} parent=1 // pred_fallthru
      _
    // Predicated region
    $region14: #{tpu_custom_call.1} parent=1 // pred_check
      _
    $region15: #{tpu_custom_call.1} parent=1 // pred_check_branch
      %67 = sbr.rel (0) target = $region17
    $region16: #{tpu_custom_call.1} parent=1 // pred_region
      %69 = vsyncadd [#allocation10], 0
      %s70 = sshll.u32 %s3, 4
      %s71 = int_to_ptr.hbm [resolvable:$true] %s70
      %s72 = sshll.u32 [#allocation9], 4
      %s73 = int_to_ptr.vmem [resolvable:$true] %s72
      %78 = dma.hbm_to_vmem [thread:$0]  %s71, 3072, %s73, [#allocation10], 192, 192, 12
    $region17: #{tpu_custom_call.1} parent=1 // pred_fallthru
      _
    // Predicated region
    $region18: #{tpu_custom_call.1} parent=1 // pred_check
      _
    $region19: #{tpu_custom_call.1} parent=1 // pred_check_branch
      %80 = sbr.rel (0) target = $region21
    $region20: #{tpu_custom_call.1} parent=1 // pred_region
      _
    $region21: #{tpu_custom_call.1} parent=1 // pred_fallthru
      _
    // Predicated region
    $region22: #{tpu_custom_call.1} parent=1 // pred_check
      _
    $region23: #{tpu_custom_call.1} parent=1 // pred_check_branch
      %82 = sbr.rel (0) target = $region25
    $region24: #{tpu_custom_call.1} parent=1 // pred_region
      %84 = vsyncadd [#allocation10], 0
      %s85 = sshll.u32 %s5, 4
      %s86 = int_to_ptr.hbm [resolvable:$true] %s85
      %s87 = sshll.u32 [#allocation11], 4
      %s88 = int_to_ptr.vmem [resolvable:$true] %s87
      %93 = dma.hbm_to_vmem [thread:$0]  %s86, 1024, %s88, [#allocation10], 64, 64, 4
    $region25: #{tpu_custom_call.1} parent=1 // pred_fallthru
      _
    // Predicated region
    $region26: #{tpu_custom_call.1} parent=1 // pred_check
      _
    $region27: #{tpu_custom_call.1} parent=1 // pred_check_branch
      %95 = sbr.rel (0) target = $region29
    $region28: #{tpu_custom_call.1} parent=1 // pred_region
      %97 = vsyncadd [#allocation13], 0
      %s99 = sshll.u32 %s6, 4
      %s100 = int_to_ptr.hbm [resolvable:$true] %s99
      %s101 = sshll.u32 [#allocation12], 4
      %s102 = int_to_ptr.vmem [resolvable:$true] %s101
      %104 = dma.hbm_to_vmem [thread:$0]  %s100, 16, %s102, [#allocation13]
    $region29: #{tpu_custom_call.1} parent=1 // pred_fallthru
      _
    // Predicated region
    $region30: #{tpu_custom_call.1} parent=1 // pred_check
      _
    $region31: #{tpu_custom_call.1} parent=1 // pred_check_branch
      %106 = sbr.rel (0) target = $region33
    $region32: #{tpu_custom_call.1} parent=1 // pred_region
      %108 = vsyncadd [#allocation13], 0
      %s109 = sshll.u32 %s7, 4
      %s110 = int_to_ptr.hbm [resolvable:$true] %s109
      %s111 = sshll.u32 [#allocation14], 4
      %s112 = int_to_ptr.vmem [resolvable:$true] %s111
      %117 = dma.hbm_to_vmem [thread:$0]  %s110, 2048, %s112, [#allocation13], 128, 128, 8
    $region33: #{tpu_custom_call.1} parent=1 // pred_fallthru
      _
    // Predicated region
    $region34: #{tpu_custom_call.1} parent=1 // pred_check
      _
    $region35: #{tpu_custom_call.1} parent=1 // pred_check_branch
      %119 = sbr.rel (0) target = $region37
    $region36: #{tpu_custom_call.1} parent=1 // pred_region
      _
    $region37: #{tpu_custom_call.1} parent=1 // pred_fallthru
      _
    // Predicated region
    $region38: #{tpu_custom_call.1} parent=1 // pred_check
      _
    $region39: #{tpu_custom_call.1} parent=1 // pred_check_branch
      %121 = sbr.rel (0) target = $region41
    $region40: #{tpu_custom_call.1} parent=1 // pred_region
      %123 = vsyncadd [#allocation16], 0
      %s124 = sshll.u32 %s9, 4
      %s125 = int_to_ptr.hbm [resolvable:$true] %s124
      %s126 = sshll.u32 [#allocation15], 4
      %s127 = int_to_ptr.vmem [resolvable:$true] %s126
      %132 = dma.hbm_to_vmem [thread:$0]  %s125, 2048, %s127, [#allocation16], 64, 64, 4
    $region41: #{tpu_custom_call.1} parent=1 // pred_fallthru
      _
    // Predicated region
    $region42: #{tpu_custom_call.1} parent=1 // pred_check
      _
    $region43: #{tpu_custom_call.1} parent=1 // pred_check_branch
      %134 = sbr.rel (0) target = $region45
    $region44: #{tpu_custom_call.1} parent=1 // pred_region
      _
    $region45: #{tpu_custom_call.1} parent=1 // pred_fallthru
      _
    // Predicated region
    $region46: #{tpu_custom_call.1} parent=1 // pred_check
      _
    $region47: #{tpu_custom_call.1} parent=1 // pred_check_branch
      %136 = sbr.rel (0) target = $region49
    $region48: #{tpu_custom_call.1} parent=1 // pred_region
      _
    $region49: #{tpu_custom_call.1} parent=1 // pred_fallthru
      _
    // Predicated region
    $region50: #{tpu_custom_call.1} parent=1 // pred_check
      _
    $region51: #{tpu_custom_call.1} parent=1 // pred_check_branch
      %138 = sbr.rel (0) target = $region53
    $region52: #{tpu_custom_call.1} parent=1 // pred_region
      _
    $region53: #{tpu_custom_call.1} parent=1 // pred_fallthru
      _
    // Predicated region
    $region54: #{tpu_custom_call.1} parent=1 // pred_check
      _
    $region55: #{tpu_custom_call.1} parent=1 // pred_check_branch
      %140 = sbr.rel (0) target = $region57
    $region56: #{tpu_custom_call.1} parent=1 // pred_region
      _
    $region57: #{tpu_custom_call.1} parent=1 // pred_fallthru
      _
    // Predicated region
    $region58: #{tpu_custom_call.1} parent=1 // pred_check
      _
    $region59: #{tpu_custom_call.1} parent=1 // pred_check_branch
      %142 = sbr.rel (0) target = $region61
    $region60: #{tpu_custom_call.1} parent=1 // pred_region
      %144 = dma.done [#allocation4], 128
    $region61: #{tpu_custom_call.1} parent=1 // pred_fallthru
      _
    // Predicated region
    $region62: #{tpu_custom_call.1} parent=1 // pred_check
      _
    $region63: #{tpu_custom_call.1} parent=1 // pred_check_branch
      %146 = sbr.rel (0) target = $region65
    $region64: #{tpu_custom_call.1} parent=1 // pred_region
      %148 = dma.done [#allocation7], 32
    $region65: #{tpu_custom_call.1} parent=1 // pred_fallthru
      _
    // Predicated region
    $region66: #{tpu_custom_call.1} parent=1 // pred_check
      _
    $region67: #{tpu_custom_call.1} parent=1 // pred_check_branch
      %150 = sbr.rel (0) target = $region69
    $region68: #{tpu_custom_call.1} parent=1 // pred_region
      %152 = dma.done [#allocation7], 16
    $region69: #{tpu_custom_call.1} parent=1 // pred_fallthru
      _
    // Predicated region
    $region70: #{tpu_custom_call.1} parent=1 // pred_check
      _
    $region71: #{tpu_custom_call.1} parent=1 // pred_check_branch
      %154 = sbr.rel (0) target = $region73
    $region72: #{tpu_custom_call.1} parent=1 // pred_region
      %156 = dma.done [#allocation10], 3072
    $region73: #{tpu_custom_call.1} parent=1 // pred_fallthru
      _
    // Predicated region
    $region74: #{tpu_custom_call.1} parent=1 // pred_check
      _
    $region75: #{tpu_custom_call.1} parent=1 // pred_check_branch
      %158 = sbr.rel (0) target = $region77
    $region76: #{tpu_custom_call.1} parent=1 // pred_region
      %160 = dma.done [#allocation10], 1024
    $region77: #{tpu_custom_call.1} parent=1 // pred_fallthru
      _
    // Predicated region
    $region78: #{tpu_custom_call.1} parent=1 // pred_check
      _
    $region79: #{tpu_custom_call.1} parent=1 // pred_check_branch
      %162 = sbr.rel (0) target = $region81
    $region80: #{tpu_custom_call.1} parent=1 // pred_region
      %164 = dma.done [#allocation13], 16
    $region81: #{tpu_custom_call.1} parent=1 // pred_fallthru
      _
    // Predicated region
    $region82: #{tpu_custom_call.1} parent=1 // pred_check
      _
    $region83: #{tpu_custom_call.1} parent=1 // pred_check_branch
      %166 = sbr.rel (0) target = $region85
    $region84: #{tpu_custom_call.1} parent=1 // pred_region
      %168 = dma.done [#allocation13], 2048
    $region85: #{tpu_custom_call.1} parent=1 // pred_fallthru
      _
    // Predicated region
    $region86: #{tpu_custom_call.1} parent=1 // pred_check
      _
    $region87: #{tpu_custom_call.1} parent=1 // pred_check_branch
      %170 = sbr.rel (0) target = $region89
    $region88: #{tpu_custom_call.1} parent=1 // pred_region
      %172 = dma.done [#allocation16], 2048
    $region89: #{tpu_custom_call.1} parent=1 // pred_fallthru
      _
    %v174 = vld [vmem:[#allocation3] sm:$0xf]
    %v175 = vld [vmem:[#allocation3 + $0x4] sm:$0xf]
    %v176 = vunpack.c.l.bf16 %v174
    %v177 = vunpack.c.l.bf16 %v175
    %v178 = vld [vmem:[#allocation9] sm:$0xff]
    %v179 = vld [vmem:[#allocation9 + $0x8] sm:$0xf]
    %v180 = vld [vmem:[#allocation9 + $0xc] sm:$0xff]
    %v181 = vld [vmem:[#allocation9 + $0x14] sm:$0xf]
    %v182 = vld [vmem:[#allocation9 + $0x18] sm:$0xff]
    %v183 = vld [vmem:[#allocation9 + $0x20] sm:$0xf]
    %v184 = vld [vmem:[#allocation9 + $0x24] sm:$0xff]
    %v185 = vld [vmem:[#allocation9 + $0x2c] sm:$0xf]
    %v186 = vld [vmem:[#allocation9 + $0x30] sm:$0xff]
    %v187 = vld [vmem:[#allocation9 + $0x38] sm:$0xf]
    %v188 = vld [vmem:[#allocation9 + $0x3c] sm:$0xff]
    %v189 = vld [vmem:[#allocation9 + $0x44] sm:$0xf]
    %v190 = vld [vmem:[#allocation9 + $0x48] sm:$0xff]
    %v191 = vld [vmem:[#allocation9 + $0x50] sm:$0xf]
    %v192 = vld [vmem:[#allocation9 + $0x54] sm:$0xff]
    %v193 = vld [vmem:[#allocation9 + $0x5c] sm:$0xf]
    %v194 = vld [vmem:[#allocation9 + $0x60] sm:$0xff]
    %v195 = vld [vmem:[#allocation9 + $0x68] sm:$0xf]
    %v196 = vld [vmem:[#allocation9 + $0x6c] sm:$0xff]
    %v197 = vld [vmem:[#allocation9 + $0x74] sm:$0xf]
    %v198 = vld [vmem:[#allocation9 + $0x78] sm:$0xff]
    %v199 = vld [vmem:[#allocation9 + $0x80] sm:$0xf]
    %v200 = vld [vmem:[#allocation9 + $0x84] sm:$0xff]
    %v201 = vld [vmem:[#allocation9 + $0x8c] sm:$0xf]
    %v202 = vld [vmem:[#allocation9 + $0x90] sm:$0xff]
    %v203 = vld [vmem:[#allocation9 + $0x98] sm:$0xf]
    %v204 = vld [vmem:[#allocation9 + $0x9c] sm:$0xff]
    %v205 = vld [vmem:[#allocation9 + $0xa4] sm:$0xf]
    %v206 = vld [vmem:[#allocation9 + $0xa8] sm:$0xff]
    %v207 = vld [vmem:[#allocation9 + $0xb0] sm:$0xf]
    %v208 = vld [vmem:[#allocation9 + $0xb4] sm:$0xff]
    %v209 = vld [vmem:[#allocation9 + $0xbc] sm:$0xf]
    %v210 = vld [vmem:[%s4] sm:$0x7]
    %v212 = vperm.slane %v210, 0
    %v213 = vperm.slane %v210, 1
    %v214 = vperm.slane %v210, 2
    %v220 = vunpack.c.l.b16 %v174
    %v221 = vunpack.c.l.b16 %v175
    %v222 = vpack.c.b16 %v221, %v220
    %v256 = vunpack.c.l.b16 %v178
    %v257 = vunpack.c.h.b16 %v178
    %v258 = vunpack.c.l.b16 %v179
    %v259 = vunpack.c.l.b16 %v180
    %v260 = vunpack.c.h.b16 %v180
    %v261 = vunpack.c.l.b16 %v181
    %v262 = vunpack.c.l.b16 %v182
    %v263 = vunpack.c.h.b16 %v182
    %v264 = vunpack.c.l.b16 %v183
    %v265 = vunpack.c.l.b16 %v184
    %v266 = vunpack.c.h.b16 %v184
    %v267 = vunpack.c.l.b16 %v185
    %v268 = vunpack.c.l.b16 %v186
    %v269 = vunpack.c.h.b16 %v186
    %v270 = vunpack.c.l.b16 %v187
    %v271 = vunpack.c.l.b16 %v188
    %v272 = vunpack.c.h.b16 %v188
    %v273 = vunpack.c.l.b16 %v189
    %v274 = vunpack.c.l.b16 %v190
    %v275 = vunpack.c.h.b16 %v190
    %v276 = vunpack.c.l.b16 %v191
    %v277 = vunpack.c.l.b16 %v192
    %v278 = vunpack.c.h.b16 %v192
    %v279 = vunpack.c.l.b16 %v193
    %v280 = vunpack.c.l.b16 %v194
    %v281 = vunpack.c.h.b16 %v194
    %v282 = vunpack.c.l.b16 %v195
    %v283 = vunpack.c.l.b16 %v196
    %v284 = vunpack.c.h.b16 %v196
    %v285 = vunpack.c.l.b16 %v197
    %v286 = vunpack.c.l.b16 %v198
    %v287 = vunpack.c.h.b16 %v198
    %v288 = vunpack.c.l.b16 %v199
    %v289 = vunpack.c.l.b16 %v200
    %v290 = vunpack.c.h.b16 %v200
    %v291 = vunpack.c.l.b16 %v201
    %v292 = vunpack.c.l.b16 %v202
    %v293 = vunpack.c.h.b16 %v202
    %v294 = vunpack.c.l.b16 %v203
    %v295 = vunpack.c.l.b16 %v204
    %v296 = vunpack.c.h.b16 %v204
    %v297 = vunpack.c.l.b16 %v205
    %v298 = vunpack.c.l.b16 %v206
    %v299 = vunpack.c.h.b16 %v206
    %v300 = vunpack.c.l.b16 %v207
    %v301 = vunpack.c.l.b16 %v208
    %v302 = vunpack.c.h.b16 %v208
    %v303 = vunpack.c.l.b16 %v209
    %v304 = vpack.c.b16 %v259, %v256
    %v305 = vpack.c.b16 %v260, %v257
    %v306 = vpack.c.b16 %v261, %v258
    %v307 = vpack.c.b16 %v265, %v262
    %v308 = vpack.c.b16 %v266, %v263
    %v309 = vpack.c.b16 %v267, %v264
    %v310 = vpack.c.b16 %v271, %v268
    %v311 = vpack.c.b16 %v272, %v269
    %v312 = vpack.c.b16 %v273, %v270
    %v313 = vpack.c.b16 %v277, %v274
    %v314 = vpack.c.b16 %v278, %v275
    %v315 = vpack.c.b16 %v279, %v276
    %v316 = vpack.c.b16 %v283, %v280
    %v317 = vpack.c.b16 %v284, %v281
    %v318 = vpack.c.b16 %v285, %v282
    %v319 = vpack.c.b16 %v289, %v286
    %v320 = vpack.c.b16 %v290, %v287
    %v321 = vpack.c.b16 %v291, %v288
    %v322 = vpack.c.b16 %v295, %v292
    %v323 = vpack.c.b16 %v296, %v293
    %v324 = vpack.c.b16 %v297, %v294
    %v325 = vpack.c.b16 %v301, %v298
    %v326 = vpack.c.b16 %v302, %v299
    %v327 = vpack.c.b16 %v303, %v300
    %352 = vmatpush.bf16.msra.mxu0 %v325
    %353 = vmatpush.bf16.msra.mxu0 %v322
    %354 = vmatpush.bf16.msra.mxu0 %v319
    %355 = vmatpush.bf16.msra.mxu0 %v316
    %356 = vmatpush.bf16.msra.mxu0 %v313
    %357 = vmatpush.bf16.msra.mxu0 %v310
    %358 = vmatpush.bf16.msra.mxu0 %v307
    %359 = vmatpush.bf16.msra.mxu0 %v304
    %360 = vmatmul.bf16.gmra.mxu0 %v222
    %v361 = vpop.f32.mrf.mxu0
    %v362 = vadd.f32 %v212, %v361
    %v363 = vpop.f32.mrf.mxu0
    %v364 = vadd.f32 %v212, %v363
    %365 = vdwg.mxu0
    %366 = vmatpush.bf16.msra.mxu0 %v326
    %367 = vmatpush.bf16.msra.mxu0 %v323
    %368 = vmatpush.bf16.msra.mxu0 %v320
    %369 = vmatpush.bf16.msra.mxu0 %v317
    %370 = vmatpush.bf16.msra.mxu0 %v314
    %371 = vmatpush.bf16.msra.mxu0 %v311
    %372 = vmatpush.bf16.msra.mxu0 %v308
    %373 = vmatpush.bf16.msra.mxu0 %v305
    %374 = vmatmul.bf16.gmra.mxu0 %v222
    %v375 = vpop.f32.mrf.mxu0
    %v376 = vadd.f32 %v213, %v375
    %v377 = vpop.f32.mrf.mxu0
    %v378 = vadd.f32 %v213, %v377
    %379 = vdwg.mxu0
    %380 = vmatpush.bf16.msra.mxu0 %v327
    %381 = vmatpush.bf16.msra.mxu0 %v324
    %382 = vmatpush.bf16.msra.mxu0 %v321
    %383 = vmatpush.bf16.msra.mxu0 %v318
    %384 = vmatpush.bf16.msra.mxu0 %v315
    %385 = vmatpush.bf16.msra.mxu0 %v312
    %386 = vmatpush.bf16.msra.mxu0 %v309
    %387 = vmatpush.bf16.msra.mxu0 %v306
    %388 = vmatmul.bf16.gmra.mxu0 %v222
    %v389 = vpop.f32.mrf.mxu0
    %v390 = vadd.f32 %v214, %v389
    %v391 = vpop.f32.mrf.mxu0
    %v392 = vadd.f32 %v214, %v391
    %393 = vdwg.mxu0
    %v394 = vpack.c.bf16 %v376, %v362
    %v395 = vpack.c.bf16 %v390, %v390
    %v396 = vpack.c.bf16 %v378, %v364
    %v397 = vpack.c.bf16 %v392, %v392
    %v400 = vrot.slane %v394, 4
    %v401 = vrot.slane %v396, 4
    %v404 = vld [vmem:[#allocation6] sm:$0x1]
    %v405 = vld [vmem:[#allocation6 + $0x1] sm:$0x1]
    %v408 = vperm.slane %v404, 0
    %v409 = vperm.slane %v405, 0
    %412 = vmatpush.bf16.xpose.msra.mxu0 0
    %413 = vmatpush.bf16.xpose.msra.mxu0 0
    %414 = vmatpush.bf16.xpose.msra.mxu0 0
    %415 = vmatpush.bf16.xpose.msra.mxu0 0
    %416 = vmatpush.bf16.xpose.msra.mxu0 0
    %417 = vmatpush.bf16.xpose.msra.mxu0 0
    %418 = vmatpush.bf16.xpose.msra.mxu0 0
    %419 = vmatpush.bf16.xpose.msra.mxu0 %v400
    %420 = vmatmul.bf16.gmra.mxu0 %v394
    %v421 = vpop.f32.mrf.mxu0
    %v422 = vadd.f32 %v408, %v421
    %v423 = vpop.f32.mrf.mxu0
    %424 = vdwg.mxu0
    %425 = vmatpush.bf16.xpose.msra.mxu0 0
    %426 = vmatpush.bf16.xpose.msra.mxu0 0
    %427 = vmatpush.bf16.xpose.msra.mxu0 0
    %428 = vmatpush.bf16.xpose.msra.mxu0 0
    %429 = vmatpush.bf16.xpose.msra.mxu0 0
    %430 = vmatpush.bf16.xpose.msra.mxu0 0
    %431 = vmatpush.bf16.xpose.msra.mxu0 0
    %432 = vmatpush.bf16.xpose.msra.mxu0 %v401
    %433 = vmatmul.bf16.gmra.mxu0 %v396
    %v434 = vpop.f32.mrf.mxu0
    %v435 = vadd.f32 %v409, %v434
    %v436 = vpop.f32.mrf.mxu0
    %437 = vdwg.mxu0
    %vm438 = vcmask 64512
    %v439 = vsel %vm438, %v422, -inf
    %440 = vmax.xlane.f32.xlu0 %v439
    %v441 = vpop.xlane.xlu0 %440
    %v442 = vsel %vm438, %v435, -inf
    %443 = vmax.xlane.f32.xlu0 %v442
    %v444 = vpop.xlane.xlu0 %443
    %v445 = vsub.f32 %v422, %v441
    %v446 = vsub.f32 %v435, %v444
    %v447 = vmul.f32 %v445, 1.442695
    %v448 = vpow.pop %v447
    %v449 = vmul.f32 %v446, 1.442695
    %v450 = vpow.pop %v449
    %v451 = vsel %vm438, %v448, 0.0
    %452 = vadd.xlane.f32.xlu0 %v451
    %v453 = vpop.xlane.xlu0 %452
    %v454 = vsel %vm438, %v450, 0.0
    %455 = vadd.xlane.f32.xlu0 %v454
    %v456 = vpop.xlane.xlu0 %455
    %v457 = vrcp.pop %v453
    %v458 = vrcp.pop %v456
    %v459 = vmul.f32 %v448, %v457
    %v460 = vmul.f32 %v450, %v458
    %v461 = vpack.c.bf16 %v459, %v459
    %v462 = vpack.c.bf16 %v460, %v460
    %v464 = vsel %vm438, %v461, 0
    %vm466 = vcmask 1043456
    %v468 = vsel %vm466, %v395, 0
    %470 = vmatpush.bf16.msra.mxu0 0
    %471 = vmatpush.bf16.msra.mxu0 0
    %472 = vmatpush.bf16.msra.mxu0 0
    %473 = vmatpush.bf16.msra.mxu0 0
    %474 = vmatpush.bf16.msra.mxu0 0
    %475 = vmatpush.bf16.msra.mxu0 0
    %476 = vmatpush.bf16.msra.mxu0 0
    %477 = vmatpush.bf16.msra.mxu0 %v468
    %478 = vmatmul.bf16.gmra.mxu0 %v464
    %v479 = vpop.f32.mrf.mxu0
    %v480 = vadd.f32 0.0, %v479
    %v481 = vpop.f32.mrf.mxu0
    %482 = vdwg.mxu0
    %v484 = vsel %vm438, %v462, 0
    %v487 = vsel %vm466, %v397, 0
    %489 = vmatpush.bf16.msra.mxu0 0
    %490 = vmatpush.bf16.msra.mxu0 0
    %491 = vmatpush.bf16.msra.mxu0 0
    %492 = vmatpush.bf16.msra.mxu0 0
    %493 = vmatpush.bf16.msra.mxu0 0
    %494 = vmatpush.bf16.msra.mxu0 0
    %495 = vmatpush.bf16.msra.mxu0 0
    %496 = vmatpush.bf16.msra.mxu0 %v487
    %497 = vmatmul.bf16.gmra.mxu0 %v484
    %v498 = vpop.f32.mrf.mxu0
    %v499 = vadd.f32 0.0, %v498
    %v500 = vpop.f32.mrf.mxu0
    %501 = vdwg.mxu0
    %v502 = vpack.c.bf16 %v499, %v480
    %v503 = vld [vmem:[#allocation11] sm:$0xf]
    %v504 = vld [vmem:[#allocation11 + $0x4] sm:$0xf]
    %v505 = vld [vmem:[#allocation11 + $0x8] sm:$0xf]
    %v506 = vld [vmem:[#allocation11 + $0xc] sm:$0xf]
    %v507 = vld [vmem:[#allocation11 + $0x10] sm:$0xf]
    %v508 = vld [vmem:[#allocation11 + $0x14] sm:$0xf]
    %v509 = vld [vmem:[#allocation11 + $0x18] sm:$0xf]
    %v510 = vld [vmem:[#allocation11 + $0x1c] sm:$0xf]
    %v511 = vld [vmem:[#allocation11 + $0x20] sm:$0xf]
    %v512 = vld [vmem:[#allocation11 + $0x24] sm:$0xf]
    %v513 = vld [vmem:[#allocation11 + $0x28] sm:$0xf]
    %v514 = vld [vmem:[#allocation11 + $0x2c] sm:$0xf]
    %v515 = vld [vmem:[#allocation11 + $0x30] sm:$0xf]
    %v516 = vld [vmem:[#allocation11 + $0x34] sm:$0xf]
    %v517 = vld [vmem:[#allocation11 + $0x38] sm:$0xf]
    %v518 = vld [vmem:[#allocation11 + $0x3c] sm:$0xf]
    %v519 = vld [vmem:[#allocation12] sm:$0x1]
    %v521 = vperm.slane %v519, 0
    %v539 = vunpack.c.l.b16 %v503
    %v540 = vunpack.c.l.b16 %v504
    %v541 = vunpack.c.l.b16 %v505
    %v542 = vunpack.c.l.b16 %v506
    %v543 = vunpack.c.l.b16 %v507
    %v544 = vunpack.c.l.b16 %v508
    %v545 = vunpack.c.l.b16 %v509
    %v546 = vunpack.c.l.b16 %v510
    %v547 = vunpack.c.l.b16 %v511
    %v548 = vunpack.c.l.b16 %v512
    %v549 = vunpack.c.l.b16 %v513
    %v550 = vunpack.c.l.b16 %v514
    %v551 = vunpack.c.l.b16 %v515
    %v552 = vunpack.c.l.b16 %v516
    %v553 = vunpack.c.l.b16 %v517
    %v554 = vunpack.c.l.b16 %v518
    %v555 = vpack.c.b16 %v540, %v539
    %v556 = vpack.c.b16 %v542, %v541
    %v557 = vpack.c.b16 %v544, %v543
    %v558 = vpack.c.b16 %v546, %v545
    %v559 = vpack.c.b16 %v548, %v547
    %v560 = vpack.c.b16 %v550, %v549
    %v561 = vpack.c.b16 %v552, %v551
    %v562 = vpack.c.b16 %v554, %v553
    %571 = vmatpush.bf16.msra.mxu0 %v562
    %572 = vmatpush.bf16.msra.mxu0 %v561
    %573 = vmatpush.bf16.msra.mxu0 %v560
    %574 = vmatpush.bf16.msra.mxu0 %v559
    %575 = vmatpush.bf16.msra.mxu0 %v558
    %576 = vmatpush.bf16.msra.mxu0 %v557
    %577 = vmatpush.bf16.msra.mxu0 %v556
    %578 = vmatpush.bf16.msra.mxu0 %v555
    %579 = vmatmul.bf16.gmra.mxu0 %v502
    %v580 = vpop.f32.mrf.mxu0
    %v581 = vadd.f32 %v521, %v580
    %v582 = vpop.f32.mrf.mxu0
    %v583 = vadd.f32 %v521, %v582
    %584 = vdwg.mxu0
    %v585 = vld [vmem:[%s11] sm:$0xf]
    %v586 = vadd.f32 %v176, %v581
    %v587 = vadd.f32 %v177, %v583
    %588 = vadd.xlane.f32.xlu0 %v586
    %v589 = vpop.xlane.xlu0 %588
    %590 = vadd.xlane.f32.xlu0 %v587
    %v591 = vpop.xlane.xlu0 %590
    %v592 = vrcp.pop 128.0
    %v593 = vmul.f32 128.0, %v592
    %v594 = vsub.f32 1.0, %v593
    %v595 = vmul.f32 %v592, %v594
    %v596 = vadd.f32 %v592, %v595
    %vm597 = vweird.f32 %v592
    %v598 = vsel %vm597, %v592, %v596
    %v599 = vmul.f32 %v589, %v598
    %v600 = vmul.f32 %v591, %v598
    %v601 = vsub.f32 %v586, %v599
    %v602 = vsub.f32 %v587, %v600
    %v603 = vmul.f32 %v601, %v601
    %v604 = vmul.f32 %v602, %v602
    %605 = vadd.xlane.f32.xlu0 %v603
    %v606 = vpop.xlane.xlu0 %605
    %607 = vadd.xlane.f32.xlu0 %v604
    %v608 = vpop.xlane.xlu0 %607
    %v609 = vmul.f32 %v606, %v598
    %v610 = vmul.f32 %v608, %v598
    %v611 = vadd.f32 %v609, 1e-06
    %v612 = vadd.f32 %v610, 1e-06
    %v613 = vrsqrt.pop %v611
    %v614 = vmul.f32 %v613, %v611
    %v615 = vmul.f32 %v614, %v613
    %v616 = vmul.f32 0.5, %v615
    %v617 = vsub.f32 1.5, %v616
    %v618 = vmul.f32 %v613, %v617
    %vm619 = vweird.f32 %v611
    %vm620 = vweird.f32 %v613
    %vm621 = vmor %vm619, %vm620
    %v622 = vsel %vm621, %v613, %v618
    %v623 = vrsqrt.pop %v612
    %v624 = vmul.f32 %v623, %v612
    %v625 = vmul.f32 %v624, %v623
    %v626 = vmul.f32 0.5, %v625
    %v627 = vsub.f32 1.5, %v626
    %v628 = vmul.f32 %v623, %v627
    %vm629 = vweird.f32 %v612
    %vm630 = vweird.f32 %v623
    %vm631 = vmor %vm629, %vm630
    %v632 = vsel %vm631, %v623, %v628
    %v633 = vmul.f32 %v601, %v622
    %v634 = vmul.f32 %v602, %v632
    %v635 = vperm.slane %v585, 0
    %v636 = vmul.f32 %v633, %v635
    %v637 = vmul.f32 %v634, %v635
    %v638 = vperm.slane %v585, 1
    %v639 = vadd.f32 %v636, %v638
    %v640 = vadd.f32 %v637, %v638
    %v641 = vpack.c.bf16 %v640, %v639
    %v642 = vld [vmem:[#allocation14] sm:$0xff]
    %v643 = vld [vmem:[#allocation14 + $0x8] sm:$0xff]
    %v644 = vld [vmem:[#allocation14 + $0x10] sm:$0xff]
    %v645 = vld [vmem:[#allocation14 + $0x18] sm:$0xff]
    %v646 = vld [vmem:[#allocation14 + $0x20] sm:$0xff]
    %v647 = vld [vmem:[#allocation14 + $0x28] sm:$0xff]
    %v648 = vld [vmem:[#allocation14 + $0x30] sm:$0xff]
    %v649 = vld [vmem:[#allocation14 + $0x38] sm:$0xff]
    %v650 = vld [vmem:[#allocation14 + $0x40] sm:$0xff]
    %v651 = vld [vmem:[#allocation14 + $0x48] sm:$0xff]
    %v652 = vld [vmem:[#allocation14 + $0x50] sm:$0xff]
    %v653 = vld [vmem:[#allocation14 + $0x58] sm:$0xff]
    %v654 = vld [vmem:[#allocation14 + $0x60] sm:$0xff]
    %v655 = vld [vmem:[#allocation14 + $0x68] sm:$0xff]
    %v656 = vld [vmem:[#allocation14 + $0x70] sm:$0xff]
    %v657 = vld [vmem:[#allocation14 + $0x78] sm:$0xff]
    %v658 = vld [vmem:[%s8] sm:$0x3]
    %v660 = vperm.slane %v658, 0
    %v661 = vperm.slane %v658, 1
    %v680 = vunpack.c.l.b16 %v642
    %v681 = vunpack.c.h.b16 %v642
    %v682 = vunpack.c.l.b16 %v643
    %v683 = vunpack.c.h.b16 %v643
    %v684 = vunpack.c.l.b16 %v644
    %v685 = vunpack.c.h.b16 %v644
    %v686 = vunpack.c.l.b16 %v645
    %v687 = vunpack.c.h.b16 %v645
    %v688 = vunpack.c.l.b16 %v646
    %v689 = vunpack.c.h.b16 %v646
    %v690 = vunpack.c.l.b16 %v647
    %v691 = vunpack.c.h.b16 %v647
    %v692 = vunpack.c.l.b16 %v648
    %v693 = vunpack.c.h.b16 %v648
    %v694 = vunpack.c.l.b16 %v649
    %v695 = vunpack.c.h.b16 %v649
    %v696 = vunpack.c.l.b16 %v650
    %v697 = vunpack.c.h.b16 %v650
    %v698 = vunpack.c.l.b16 %v651
    %v699 = vunpack.c.h.b16 %v651
    %v700 = vunpack.c.l.b16 %v652
    %v701 = vunpack.c.h.b16 %v652
    %v702 = vunpack.c.l.b16 %v653
    %v703 = vunpack.c.h.b16 %v653
    %v704 = vunpack.c.l.b16 %v654
    %v705 = vunpack.c.h.b16 %v654
    %v706 = vunpack.c.l.b16 %v655
    %v707 = vunpack.c.h.b16 %v655
    %v708 = vunpack.c.l.b16 %v656
    %v709 = vunpack.c.h.b16 %v656
    %v710 = vunpack.c.l.b16 %v657
    %v711 = vunpack.c.h.b16 %v657
    %v712 = vpack.c.b16 %v682, %v680
    %v713 = vpack.c.b16 %v683, %v681
    %v714 = vpack.c.b16 %v686, %v684
    %v715 = vpack.c.b16 %v687, %v685
    %v716 = vpack.c.b16 %v690, %v688
    %v717 = vpack.c.b16 %v691, %v689
    %v718 = vpack.c.b16 %v694, %v692
    %v719 = vpack.c.b16 %v695, %v693
    %v720 = vpack.c.b16 %v698, %v696
    %v721 = vpack.c.b16 %v699, %v697
    %v722 = vpack.c.b16 %v702, %v700
    %v723 = vpack.c.b16 %v703, %v701
    %v724 = vpack.c.b16 %v706, %v704
    %v725 = vpack.c.b16 %v707, %v705
    %v726 = vpack.c.b16 %v710, %v708
    %v727 = vpack.c.b16 %v711, %v709
    %744 = vmatpush.bf16.msra.mxu0 %v726
    %745 = vmatpush.bf16.msra.mxu0 %v724
    %746 = vmatpush.bf16.msra.mxu0 %v722
    %747 = vmatpush.bf16.msra.mxu0 %v720
    %748 = vmatpush.bf16.msra.mxu0 %v718
    %749 = vmatpush.bf16.msra.mxu0 %v716
    %750 = vmatpush.bf16.msra.mxu0 %v714
    %751 = vmatpush.bf16.msra.mxu0 %v712
    %752 = vmatmul.bf16.gmra.mxu0 %v641
    %v753 = vpop.f32.mrf.mxu0
    %v754 = vadd.f32 %v660, %v753
    %v755 = vpop.f32.mrf.mxu0
    %v756 = vadd.f32 %v660, %v755
    %757 = vdwg.mxu0
    %758 = vmatpush.bf16.msra.mxu0 %v727
    %759 = vmatpush.bf16.msra.mxu0 %v725
    %760 = vmatpush.bf16.msra.mxu0 %v723
    %761 = vmatpush.bf16.msra.mxu0 %v721
    %762 = vmatpush.bf16.msra.mxu0 %v719
    %763 = vmatpush.bf16.msra.mxu0 %v717
    %764 = vmatpush.bf16.msra.mxu0 %v715
    %765 = vmatpush.bf16.msra.mxu0 %v713
    %766 = vmatmul.bf16.gmra.mxu0 %v641
    %v767 = vpop.f32.mrf.mxu0
    %v768 = vadd.f32 %v661, %v767
    %v769 = vpop.f32.mrf.mxu0
    %v770 = vadd.f32 %v661, %v769
    %771 = vdwg.mxu0
    %v772 = vmul.f32 %v754, %v754
    %v773 = vmul.f32 %v768, %v768
    %v774 = vmul.f32 %v756, %v756
    %v775 = vmul.f32 %v770, %v770
    %v776 = vmul.f32 %v754, %v772
    %v777 = vmul.f32 %v768, %v773
    %v778 = vmul.f32 %v756, %v774
    %v779 = vmul.f32 %v770, %v775
    %v780 = vmul.f32 %v776, 0.044715
    %v781 = vmul.f32 %v777, 0.044715
    %v782 = vmul.f32 %v778, 0.044715
    %v783 = vmul.f32 %v779, 0.044715
    %v784 = vadd.f32 %v754, %v780
    %v785 = vadd.f32 %v768, %v781
    %v786 = vadd.f32 %v756, %v782
    %v787 = vadd.f32 %v770, %v783
    %v788 = vmul.f32 %v784, 0.7978846
    %v789 = vmul.f32 %v785, 0.7978846
    %v790 = vmul.f32 %v786, 0.7978846
    %v791 = vmul.f32 %v787, 0.7978846
    %v792 = vtanh.pop %v788
    %v793 = vtanh.pop %v789
    %v794 = vtanh.pop %v790
    %v795 = vtanh.pop %v791
    %v796 = vadd.f32 %v792, 1.0
    %v797 = vadd.f32 %v793, 1.0
    %v798 = vadd.f32 %v794, 1.0
    %v799 = vadd.f32 %v795, 1.0
    %v800 = vmul.f32 %v796, 0.5
    %v801 = vmul.f32 %v797, 0.5
    %v802 = vmul.f32 %v798, 0.5
    %v803 = vmul.f32 %v799, 0.5
    %v804 = vmul.f32 %v754, %v800
    %v805 = vmul.f32 %v768, %v801
    %v806 = vmul.f32 %v756, %v802
    %v807 = vmul.f32 %v770, %v803
    %v808 = vpack.c.bf16 %v806, %v804
    %v809 = vpack.c.bf16 %v807, %v805
    %v810 = vld [vmem:[#allocation15] sm:$0xf]
    %v811 = vld [vmem:[#allocation15 + $0x4] sm:$0xf]
    %v812 = vld [vmem:[#allocation15 + $0x8] sm:$0xf]
    %v813 = vld [vmem:[#allocation15 + $0xc] sm:$0xf]
    %v814 = vld [vmem:[#allocation15 + $0x10] sm:$0xf]
    %v815 = vld [vmem:[#allocation15 + $0x14] sm:$0xf]
    %v816 = vld [vmem:[#allocation15 + $0x18] sm:$0xf]
    %v817 = vld [vmem:[#allocation15 + $0x1c] sm:$0xf]
    %v818 = vld [vmem:[#allocation15 + $0x20] sm:$0xf]
    %v819 = vld [vmem:[#allocation15 + $0x24] sm:$0xf]
    %v820 = vld [vmem:[#allocation15 + $0x28] sm:$0xf]
    %v821 = vld [vmem:[#allocation15 + $0x2c] sm:$0xf]
    %v822 = vld [vmem:[#allocation15 + $0x30] sm:$0xf]
    %v823 = vld [vmem:[#allocation15 + $0x34] sm:$0xf]
    %v824 = vld [vmem:[#allocation15 + $0x38] sm:$0xf]
    %v825 = vld [vmem:[#allocation15 + $0x3c] sm:$0xf]
    %v826 = vld [vmem:[#allocation15 + $0x40] sm:$0xf]
    %v827 = vld [vmem:[#allocation15 + $0x44] sm:$0xf]
    %v828 = vld [vmem:[#allocation15 + $0x48] sm:$0xf]
    %v829 = vld [vmem:[#allocation15 + $0x4c] sm:$0xf]
    %v830 = vld [vmem:[#allocation15 + $0x50] sm:$0xf]
    %v831 = vld [vmem:[#allocation15 + $0x54] sm:$0xf]
    %v832 = vld [vmem:[#allocation15 + $0x58] sm:$0xf]
    %v833 = vld [vmem:[#allocation15 + $0x5c] sm:$0xf]
    %v834 = vld [vmem:[#allocation15 + $0x60] sm:$0xf]
    %v835 = vld [vmem:[#allocation15 + $0x64] sm:$0xf]
    %v836 = vld [vmem:[#allocation15 + $0x68] sm:$0xf]
    %v837 = vld [vmem:[#allocation15 + $0x6c] sm:$0xf]
    %v838 = vld [vmem:[#allocation15 + $0x70] sm:$0xf]
    %v839 = vld [vmem:[#allocation15 + $0x74] sm:$0xf]
    %v840 = vld [vmem:[#allocation15 + $0x78] sm:$0xf]
    %v841 = vld [vmem:[#allocation15 + $0x7c] sm:$0xf]
    %v842 = vld [vmem:[%s10] sm:$0x1]
    %v844 = vperm.slane %v842, 0
    %v878 = vunpack.c.l.b16 %v810
    %v879 = vunpack.c.l.b16 %v811
    %v880 = vunpack.c.l.b16 %v812
    %v881 = vunpack.c.l.b16 %v813
    %v882 = vunpack.c.l.b16 %v814
    %v883 = vunpack.c.l.b16 %v815
    %v884 = vunpack.c.l.b16 %v816
    %v885 = vunpack.c.l.b16 %v817
    %v886 = vunpack.c.l.b16 %v818
    %v887 = vunpack.c.l.b16 %v819
    %v888 = vunpack.c.l.b16 %v820
    %v889 = vunpack.c.l.b16 %v821
    %v890 = vunpack.c.l.b16 %v822
    %v891 = vunpack.c.l.b16 %v823
    %v892 = vunpack.c.l.b16 %v824
    %v893 = vunpack.c.l.b16 %v825
    %v894 = vunpack.c.l.b16 %v826
    %v895 = vunpack.c.l.b16 %v827
    %v896 = vunpack.c.l.b16 %v828
    %v897 = vunpack.c.l.b16 %v829
    %v898 = vunpack.c.l.b16 %v830
    %v899 = vunpack.c.l.b16 %v831
    %v900 = vunpack.c.l.b16 %v832
    %v901 = vunpack.c.l.b16 %v833
    %v902 = vunpack.c.l.b16 %v834
    %v903 = vunpack.c.l.b16 %v835
    %v904 = vunpack.c.l.b16 %v836
    %v905 = vunpack.c.l.b16 %v837
    %v906 = vunpack.c.l.b16 %v838
    %v907 = vunpack.c.l.b16 %v839
    %v908 = vunpack.c.l.b16 %v840
    %v909 = vunpack.c.l.b16 %v841
    %v910 = vpack.c.b16 %v879, %v878
    %v911 = vpack.c.b16 %v881, %v880
    %v912 = vpack.c.b16 %v883, %v882
    %v913 = vpack.c.b16 %v885, %v884
    %v914 = vpack.c.b16 %v887, %v886
    %v915 = vpack.c.b16 %v889, %v888
    %v916 = vpack.c.b16 %v891, %v890
    %v917 = vpack.c.b16 %v893, %v892
    %v918 = vpack.c.b16 %v895, %v894
    %v919 = vpack.c.b16 %v897, %v896
    %v920 = vpack.c.b16 %v899, %v898
    %v921 = vpack.c.b16 %v901, %v900
    %v922 = vpack.c.b16 %v903, %v902
    %v923 = vpack.c.b16 %v905, %v904
    %v924 = vpack.c.b16 %v907, %v906
    %v925 = vpack.c.b16 %v909, %v908
    %942 = vmatpush.bf16.msra.mxu0 %v917
    %943 = vmatpush.bf16.msra.mxu0 %v916
    %944 = vmatpush.bf16.msra.mxu0 %v915
    %945 = vmatpush.bf16.msra.mxu0 %v914
    %946 = vmatpush.bf16.msra.mxu0 %v913
    %947 = vmatpush.bf16.msra.mxu0 %v912
    %948 = vmatpush.bf16.msra.mxu0 %v911
    %949 = vmatpush.bf16.msra.mxu0 %v910
    %950 = vmatmul.bf16.gmra.mxu0 %v808
    %v951 = vpop.f32.mrf.mxu0
    %v952 = vadd.f32 %v844, %v951
    %v953 = vpop.f32.mrf.mxu0
    %v954 = vadd.f32 %v844, %v953
    %955 = vdwg.mxu0
    %956 = vmatpush.bf16.msra.mxu0 %v925
    %957 = vmatpush.bf16.msra.mxu0 %v924
    %958 = vmatpush.bf16.msra.mxu0 %v923
    %959 = vmatpush.bf16.msra.mxu0 %v922
    %960 = vmatpush.bf16.msra.mxu0 %v921
    %961 = vmatpush.bf16.msra.mxu0 %v920
    %962 = vmatpush.bf16.msra.mxu0 %v919
    %963 = vmatpush.bf16.msra.mxu0 %v918
    %964 = vmatmul.bf16.gmra.mxu0 %v809
    %v965 = vpop.f32.mrf.mxu0
    %v966 = vadd.f32 %v952, %v965
    %v967 = vpop.f32.mrf.mxu0
    %v968 = vadd.f32 %v954, %v967
    %969 = vdwg.mxu0
    %v970 = vadd.f32 %v639, %v966
    %v971 = vadd.f32 %v640, %v968
    %972 = vadd.xlane.f32.xlu0 %v970
    %v973 = vpop.xlane.xlu0 %972
    %974 = vadd.xlane.f32.xlu0 %v971
    %v975 = vpop.xlane.xlu0 %974
    %v976 = vmul.f32 %v973, %v598
    %v977 = vmul.f32 %v975, %v598
    %v978 = vsub.f32 %v970, %v976
    %v979 = vsub.f32 %v971, %v977
    %v980 = vmul.f32 %v978, %v978
    %v981 = vmul.f32 %v979, %v979
    %982 = vadd.xlane.f32.xlu0 %v980
    %v983 = vpop.xlane.xlu0 %982
    %984 = vadd.xlane.f32.xlu0 %v981
    %v985 = vpop.xlane.xlu0 %984
    %v986 = vmul.f32 %v983, %v598
    %v987 = vmul.f32 %v985, %v598
    %v988 = vadd.f32 %v986, 1e-06
    %v989 = vadd.f32 %v987, 1e-06
    %v990 = vrsqrt.pop %v988
    %v991 = vmul.f32 %v990, %v988
    %v992 = vmul.f32 %v991, %v990
    %v993 = vmul.f32 0.5, %v992
    %v994 = vsub.f32 1.5, %v993
    %v995 = vmul.f32 %v990, %v994
    %vm996 = vweird.f32 %v988
    %vm997 = vweird.f32 %v990
    %vm998 = vmor %vm996, %vm997
    %v999 = vsel %vm998, %v990, %v995
    %v1000 = vrsqrt.pop %v989
    %v1001 = vmul.f32 %v1000, %v989
    %v1002 = vmul.f32 %v1001, %v1000
    %v1003 = vmul.f32 0.5, %v1002
    %v1004 = vsub.f32 1.5, %v1003
    %v1005 = vmul.f32 %v1000, %v1004
    %vm1006 = vweird.f32 %v989
    %vm1007 = vweird.f32 %v1000
    %vm1008 = vmor %vm1006, %vm1007
    %v1009 = vsel %vm1008, %v1000, %v1005
    %v1010 = vmul.f32 %v978, %v999
    %v1011 = vmul.f32 %v979, %v1009
    %v1012 = vperm.slane %v585, 2
    %v1013 = vmul.f32 %v1010, %v1012
    %v1014 = vmul.f32 %v1011, %v1012
    %v1015 = vperm.slane %v585, 3
    %v1016 = vadd.f32 %v1013, %v1015
    %v1017 = vadd.f32 %v1014, %v1015
    %v1018 = vld [vmem:[%s12] sm:$0x1]
    %s1019 = sld [smem:[#allocation2]]
    %v1020 = vstv %s1019
    %1021 = vmatpush.xpose.msra.mxu0 0.0
    %1022 = vmatpush.xpose.msra.mxu0 0.0
    %1023 = vmatpush.xpose.msra.mxu0 0.0
    %1024 = vmatpush.xpose.msra.mxu0 0.0
    %1025 = vmatpush.xpose.msra.mxu0 0.0
    %1026 = vmatpush.xpose.msra.mxu0 0.0
    %1027 = vmatpush.xpose.msra.mxu0 0.0
    %1028 = vmatpush.xpose.msra.mxu0 0.0
    %1029 = vmatpush.xpose.msra.mxu0 0.0
    %1030 = vmatpush.xpose.msra.mxu0 0.0
    %1031 = vmatpush.xpose.msra.mxu0 0.0
    %1032 = vmatpush.xpose.msra.mxu0 0.0
    %1033 = vmatpush.xpose.msra.mxu0 0.0
    %1034 = vmatpush.xpose.msra.mxu0 0.0
    %1035 = vmatpush.xpose.msra.mxu0 %v1017
    %1036 = vmatpush.xpose.msra.mxu0 %v1016
    %1037 = vmatmul.f32.gmra.mxu0 %v1018
    %v1038 = vpop.f32.mrf.mxu0
    %v1039 = vadd.f32 %v1020, %v1038
    %1040 = vdwg.mxu0
    %v1041 = vxor.u32 %v1039, 2147483648
    %v1042 = vmul.f32 %v1041, 1.442695
    %v1043 = vpow.pop %v1042
    %v1044 = vadd.f32 %v1043, 1.0
    %v1045 = vrcp.pop %v1044
    %v1046 = vmul.f32 %v1044, %v1045
    %v1047 = vsub.f32 1.0, %v1046
    %v1048 = vmul.f32 %v1045, %v1047
    %v1049 = vadd.f32 %v1045, %v1048
    %vm1050 = vweird.f32 %v1044
    %vm1051 = vweird.f32 %v1045
    %vm1052 = vmor %vm1050, %vm1051
    %v1053 = vsel %vm1052, %v1045, %v1049
    %v1054 = vand.u32 2147483647, %v1044
    %vm1055 = vcmp.eq.f32.partialorder %v1054, 8.507059e+37
    %v1056 = vand.u32 %v1044, 2147483648
    %v1057 = vor.u32 1.1754944e-38, %v1056
    %v1058 = vsel %vm1055, %v1057, %v1053
    %v1059 = vmul.f32 1.0, %v1058
    %vm1060 = vcmask 122880
    %1061 = vst.msk [vmem:[#allocation17] sm:$0x1] %vm1060, %v1059
    %v1062 = vld [vmem:[#allocation8] sm:$0x1]
    %v1063 = vmax.f32 %v1039, 0.0
    %v1064 = vmul.f32 %v1039, %v1062
    %v1065 = vsub.f32 %v1063, %v1064
    %v1066 = vand.u32 2147483647, %v1039
    %v1067 = vsub.f32 0.0, %v1066
    %v1068 = vmul.f32 %v1067, 1.442695
    %v1069 = vpow.pop %v1068
    %v1070 = vadd.f32 %v1069, 1.0
    %v1071 = vlog2.pop %v1070
    %v1072 = vmul.f32 %v1071, 0.6931472
    %v1073 = vmul.f32 -0.5, %v1069
    %v1074 = vadd.f32 %v1073, 1.0
    %v1075 = vmul.f32 %v1074, %v1069
    %v1076 = vand.u32 2147483647, %v1069
    %vm1077 = vcmp.lt.f32.partialorder %v1076, 0.0004427343
    %v1078 = vsel %vm1077, %v1075, %v1072
    %v1079 = vadd.f32 %v1065, %v1078
    %vm1080 = vcmp.ne.f32.partialorder %v1062, -100.0
    %v1081 = vsel %vm1080, %v1079, 0.0
    %1082 = vst.msk [vmem:[#allocation18] sm:$0x1] %vm1060, %v1081
    // Predicated region
    $region90: #{tpu_custom_call.1} parent=1 // pred_check
      _
    $region91: #{tpu_custom_call.1} parent=1 // pred_check_branch
      %1084 = sbr.rel (0) target = $region93
    $region92: #{tpu_custom_call.1} parent=1 // pred_region
      %1086 = vsyncadd [#allocation5], 0
      %s1088 = sshll.u32 [#allocation17], 4
      %s1089 = int_to_ptr.vmem [resolvable:$true] %s1088
      %s1090 = sshll.u32 %s14, 4
      %s1091 = int_to_ptr.hbm [resolvable:$true] %s1090
      %1093 = dma.vmem_to_hbm [thread:$0]  %s1089, 16, %s1091, [#allocation5]
    $region93: #{tpu_custom_call.1} parent=1 // pred_fallthru
      _
    // Predicated region
    $region94: #{tpu_custom_call.1} parent=1 // pred_check
      _
    $region95: #{tpu_custom_call.1} parent=1 // pred_check_branch
      %1095 = sbr.rel (0) target = $region97
    $region96: #{tpu_custom_call.1} parent=1 // pred_region
      %1097 = vsyncadd [#allocation19], 0
      %s1099 = sshll.u32 [#allocation18], 4
      %s1100 = int_to_ptr.vmem [resolvable:$true] %s1099
      %s1101 = sshll.u32 %s15, 4
      %s1102 = int_to_ptr.hbm [resolvable:$true] %s1101
      %1104 = dma.vmem_to_hbm [thread:$0]  %s1100, 16, %s1102, [#allocation19]
    $region97: #{tpu_custom_call.1} parent=1 // pred_fallthru
      _
    // Predicated region
    $region98: #{tpu_custom_call.1} parent=1 // pred_check
      _
    $region99: #{tpu_custom_call.1} parent=1 // pred_check_branch
      %1106 = sbr.rel (0) target = $region101
    $region100: #{tpu_custom_call.1} parent=1 // pred_region
      %1108 = dma.done [#allocation5], 16
    $region101: #{tpu_custom_call.1} parent=1 // pred_fallthru
      _
    // Predicated region
    $region102: #{tpu_custom_call.1} parent=1 // pred_check
      _
    $region103: #{tpu_custom_call.1} parent=1 // pred_check_branch
      %1110 = sbr.rel (0) target = $region105
    $region104: #{tpu_custom_call.1} parent=1 // pred_region
      %1112 = dma.done [#allocation19], 16
    $region105: #{tpu_custom_call.1} parent=1 // pred_fallthru
      _
    %1113 = vsyncpa [#allocation4], 1
    %1114 = vsyncpa [#allocation7], 1
    %1115 = vsyncpa [#allocation10], 1
    %1116 = vsyncpa [#allocation13], 1
    %1117 = vsyncpa [#allocation16], 1
    %1118 = vsyncpa [#allocation5], 1
    %1119 = vsyncpa [#allocation19], 1

</llo_original>
